<compile_context>
chip_gen: v7x
topology: tpu7x:2x2x1
jax: 0.10.0
libtpu: 0.0.40
codegen_flags: <defaults>
</compile_context>

<pallas_src>
import math
import functools

import jax
import jax.numpy as jnp
from jax import lax
from jax.experimental import pallas as pl
from jax.experimental.pallas import tpu as pltpu


# -----------------------------------------------------------------------------
# Tile choosers
# -----------------------------------------------------------------------------
def _choose_row_tile(rows, pref):
    if rows % pref == 0:
        return pref
    if rows % 8 != 0:
        return rows
    cands = [t for t in range(8, min(pref, rows) + 1, 8) if rows % t == 0]
    return cands[-1] if cands else rows


def _choose_q_tile(seq, batch, pref):
    if seq % 8 != 0:
        return seq
    cands = [t for t in range(8, min(pref, seq) + 1, 8) if seq % t == 0]
    if not cands:
        return seq
    best = cands[-1]
    # Keep >= 2 grid steps when possible (v7x has 2 TensorCores per chip).
    if batch * (seq // best) < 2:
        for t in reversed(cands[:-1]):
            if batch * (seq // t) >= 2:
                return t
    return best


# -----------------------------------------------------------------------------
# Kernel 1: fused QKV projection.
#   y = x @ [Wq | Wk | Wv] + [bq | bk | bv]  -> split into q/k/v outputs.
#   Weights are pre-scaled (query) and pre-cast (bf16 path) in the wrapper.
# -----------------------------------------------------------------------------
def _fused_qkv_kernel(x_ref, w_ref, b_ref, q_ref, k_ref, v_ref, *, out_dim,
                      use_bf16):
    x = x_ref[...]
    if use_bf16:
        x = x.astype(jnp.bfloat16)            # per-tile cast; weights already bf16
    y = jnp.dot(x, w_ref[...], preferred_element_type=jnp.float32)  # (TM, 3*Out)
    y = y + b_ref[...].astype(jnp.float32)
    q_ref[...] = y[:, :out_dim].astype(q_ref.dtype)
    k_ref[...] = y[:, out_dim:2 * out_dim].astype(k_ref.dtype)
    v_ref[...] = y[:, 2 * out_dim:3 * out_dim].astype(v_ref.dtype)


def pallas_fused_qkv(x2d, w_cat, b_cat, *, out_dim, row_tile=512,
                     use_bf16=True):
    """x2d: (R, In); w_cat: (In, 3*Out); b_cat: (3*Out,) -> (q, k, v) each (R, Out)."""
    R, In = x2d.shape
    assert w_cat.shape == (In, 3 * out_dim)
    TM = _choose_row_tile(R, row_tile)
    b2 = b_cat.reshape(1, 3 * out_dim)
    out_dtype = jnp.bfloat16 if use_bf16 else x2d.dtype
    kern = functools.partial(_fused_qkv_kernel, out_dim=out_dim,
                             use_bf16=use_bf16)
    out_sds = jax.ShapeDtypeStruct((R, out_dim), out_dtype)
    o_spec = pl.BlockSpec((TM, out_dim), lambda i: (i, 0))
    # TODO(synk): also tile the In (contraction) axis if hidden_size gets very large.
    return pl.pallas_call(
        kern,
        out_shape=(out_sds, out_sds, out_sds),
        grid=(R // TM,),
        in_specs=[
            pl.BlockSpec((TM, In), lambda i: (i, 0)),
            pl.BlockSpec((In, 3 * out_dim), lambda i: (0, 0)),   # resident weight
            pl.BlockSpec((1, 3 * out_dim), lambda i: (0, 0)),
        ],
        out_specs=(o_spec, o_spec, o_spec),
        compiler_params=pltpu.CompilerParams(
            dimension_semantics=("parallel",),
            vmem_limit_bytes=64 * 1024 * 1024),
    )(x2d, w_cat, b2)


# -----------------------------------------------------------------------------
# Kernel 2: fused dual (text + layout) attention.
#   Layout in/out: (B, S, H*D) and (B, S, H*Dl) -- no head transposes outside.
#   Per head (queries already pre-scaled by 1/sqrt(D), 1/sqrt(Dl)):
#     scores = q_h @ k_h^T + lq_h @ lk_h^T + mask
#     probs  = softmax(scores)              (single softmax; detach is bwd-only)
#     ctx_h  = probs @ v_h ;  lctx_h = probs @ lv_h
# -----------------------------------------------------------------------------
def _lilt_attn_kernel(q_ref, k_ref, v_ref, lq_ref, lk_ref, lv_ref, mask_ref,
                      o_ref, lo_ref, *, num_heads, head_dim, layout_head_dim):
    H, D, Dl = num_heads, head_dim, layout_head_dim
    q = q_ref[0]                                 # (Tq, H*D)
    k = k_ref[0]                                 # (S,  H*D)
    v = v_ref[0]                                 # (S,  H*D)
    lq = lq_ref[0]                               # (Tq, H*Dl)
    lk = lk_ref[0]                               # (S,  H*Dl)
    lv = lv_ref[0]                               # (S,  H*Dl)
    mask = mask_ref[0].astype(jnp.float32)       # (1, S) additive
    mm_dtype = q.dtype                           # bf16 or f32, set by QKV kernel
    dn = (((1,), (1,)), ((), ()))                # contract last dims -> (Tq, S)

    ctx_heads = []
    lctx_heads = []
    for h in range(H):                           # static unroll over heads
        qh = q[:, h * D:(h + 1) * D]
        kh = k[:, h * D:(h + 1) * D]
        lqh = lq[:, h * Dl:(h + 1) * Dl]
        lkh = lk[:, h * Dl:(h + 1) * Dl]

        scores = lax.dot_general(qh, kh, dn, preferred_element_type=jnp.float32)
        scores = scores + lax.dot_general(lqh, lkh, dn,
                                          preferred_element_type=jnp.float32)
        scores = scores + mask                                       # (Tq, S)

        # Numerically stable softmax (fp32); denominator via EUP reciprocal.
        m = jnp.max(scores, axis=-1, keepdims=True)
        e = jnp.exp(scores - m)
        denom = jnp.sum(e, axis=-1, keepdims=True)
        probs = (e * pl.reciprocal(denom, approx=True)).astype(mm_dtype)

        ctx_heads.append(jnp.dot(probs, v[:, h * D:(h + 1) * D],
                                 preferred_element_type=jnp.float32))
        lctx_heads.append(jnp.dot(probs, lv[:, h * Dl:(h + 1) * Dl],
                                  preferred_element_type=jnp.float32))

    # Single lane-dense store of the full feature width per output.
    o_ref[0] = jnp.concatenate(ctx_heads, axis=-1).astype(o_ref.dtype)
    lo_ref[0] = jnp.concatenate(lctx_heads, axis=-1).astype(lo_ref.dtype)


def lilt_dual_attention(q, k, v, lq, lk, lv, attention_mask, *, num_heads,
                        out_dtype, q_tile=256):
    """q,k,v: (B,S,H*D); lq,lk,lv: (B,S,H*Dl); mask: (B,1,1,S) additive."""
    B, S, HD = q.shape
    LHD = lq.shape[-1]
    D = HD // num_heads
    Dl = LHD // num_heads
    Tq = _choose_q_tile(S, B, q_tile)
    mask3 = attention_mask.reshape(B, 1, S)

    kern = functools.partial(_lilt_attn_kernel, num_heads=num_heads,
                             head_dim=D, layout_head_dim=Dl)

    q_spec = pl.BlockSpec((1, Tq, HD), lambda b, i: (b, i, 0))
    kv_spec = pl.BlockSpec((1, S, HD), lambda b, i: (b, 0, 0))
    lq_spec = pl.BlockSpec((1, Tq, LHD), lambda b, i: (b, i, 0))
    lkv_spec = pl.BlockSpec((1, S, LHD), lambda b, i: (b, 0, 0))
    # Mask index_map is constant over the inner (q-tile) axis -> no re-DMA per tile.
    mask_spec = pl.BlockSpec((1, 1, S), lambda b, i: (b, 0, 0))

    return pl.pallas_call(
        kern,
        out_shape=(
            jax.ShapeDtypeStruct((B, S, HD), out_dtype),
            jax.ShapeDtypeStruct((B, S, LHD), out_dtype),
        ),
        grid=(B, S // Tq),
        in_specs=[q_spec, kv_spec, kv_spec, lq_spec, lkv_spec, lkv_spec,
                  mask_spec],
        out_specs=(q_spec, lq_spec),
        compiler_params=pltpu.CompilerParams(
            dimension_semantics=("parallel", "parallel"),
            vmem_limit_bytes=48 * 1024 * 1024),
    )(q, k, v, lq, lk, lv, mask3)


# -----------------------------------------------------------------------------
# Module wrapper
# -----------------------------------------------------------------------------
def init_params(key, hidden, num_heads, shrink):
    layout_hidden = hidden // shrink
    names_dims = {
        "query": (hidden, hidden), "key": (hidden, hidden), "value": (hidden, hidden),
        "layout_query": (layout_hidden, layout_hidden),
        "layout_key": (layout_hidden, layout_hidden),
        "layout_value": (layout_hidden, layout_hidden),
    }
    params = {}
    for i, (name, (din, dout)) in enumerate(names_dims.items()):
        kw, kb = jax.random.split(jax.random.fold_in(key, i))
        params[name] = {
            "w": jax.random.normal(kw, (din, dout), jnp.float32) * (1.0 / math.sqrt(din)),
            "b": jax.random.normal(kb, (dout,), jnp.float32) * 0.02,
        }
    return params


def lilt_self_attention_forward(params, hidden_states, layout_hidden_states,
                                attention_mask, num_heads, shrink,
                                use_bf16=True):
    B, S, Hdim = hidden_states.shape
    LHdim = Hdim // shrink
    D = Hdim // num_heads
    Dl = D // shrink

    x2d = hidden_states.reshape(B * S, Hdim)
    lx2d = layout_hidden_states.reshape(B * S, LHdim)

    # Fold the 1/sqrt(head_dim) score scaling into the query projections
    # (constant-folds under jit; removes per-head VPU multiplies in-kernel).
    inv_sqrt_d = 1.0 / math.sqrt(D)
    inv_sqrt_dl = 1.0 / math.sqrt(Dl)
    wq = params["query"]["w"] * inv_sqrt_d
    bq = params["query"]["b"] * inv_sqrt_d
    wlq = params["layout_query"]["w"] * inv_sqrt_dl
    blq = params["layout_query"]["b"] * inv_sqrt_dl

    # Concatenated QKV weights; pre-cast to bf16 on the bf16 path so the
    # resident weight DMA / VMEM footprint is halved.
    w_qkv = jnp.concatenate([wq, params["key"]["w"], params["value"]["w"]], axis=1)
    b_qkv = jnp.concatenate([bq, params["key"]["b"], params["value"]["b"]], axis=0)
    w_lqkv = jnp.concatenate(
        [wlq, params["layout_key"]["w"], params["layout_value"]["w"]], axis=1)
    b_lqkv = jnp.concatenate(
        [blq, params["layout_key"]["b"], params["layout_value"]["b"]], axis=0)
    if use_bf16:
        w_qkv = w_qkv.astype(jnp.bfloat16)
        b_qkv = b_qkv.astype(jnp.bfloat16)
        w_lqkv = w_lqkv.astype(jnp.bfloat16)
        b_lqkv = b_lqkv.astype(jnp.bfloat16)

    q2, k2, v2 = pallas_fused_qkv(x2d, w_qkv, b_qkv, out_dim=Hdim,
                                  use_bf16=use_bf16)
    lq2, lk2, lv2 = pallas_fused_qkv(lx2d, w_lqkv, b_lqkv, out_dim=LHdim,
                                     use_bf16=use_bf16)

    # (B*S, F) -> (B, S, F) is a free reshape; heads are split inside the
    # attention kernel, so no (0,2,1,3) transposes exist anywhere.
    q = q2.reshape(B, S, Hdim)
    k = k2.reshape(B, S, Hdim)
    v = v2.reshape(B, S, Hdim)
    lq = lq2.reshape(B, S, LHdim)
    lk = lk2.reshape(B, S, LHdim)
    lv = lv2.reshape(B, S, LHdim)

    context, layout_context = lilt_dual_attention(
        q, k, v, lq, lk, lv, attention_mask, num_heads=num_heads,
        out_dtype=hidden_states.dtype)
    return context, layout_context


# -----------------------------------------------------------------------------
# Pure-JAX reference (sanity check against the Pallas path)
# -----------------------------------------------------------------------------
def reference_forward(params, hidden_states, layout_hidden_states,
                      attention_mask, num_heads, shrink):
    B, S, Hdim = hidden_states.shape
    D = Hdim // num_heads
    Dl = D // shrink

    def lin(name, x):
        return x @ params[name]["w"] + params[name]["b"]

    def split(y, d):
        return y.reshape(B, S, num_heads, d).transpose(0, 2, 1, 3)

    q = split(lin("query", hidden_states), D)
    k = split(lin("key", hidden_states), D)
    v = split(lin("value", hidden_states), D)
    lq = split(lin("layout_query", layout_hidden_states), Dl)
    lk = split(lin("layout_key", layout_hidden_states), Dl)
    lv = split(lin("layout_value", layout_hidden_states), Dl)

    s = jnp.einsum("bhqd,bhkd->bhqk", q, k) / math.sqrt(D)
    ls = jnp.einsum("bhqd,bhkd->bhqk", lq, lk) / math.sqrt(Dl)
    total = s + ls + attention_mask
    probs = jax.nn.softmax(total, axis=-1)
    ctx = jnp.einsum("bhqk,bhkd->bhqd", probs, v)
    lctx = jnp.einsum("bhqk,bhkd->bhqd", probs, lv)
    context = ctx.transpose(0, 2, 1, 3).reshape(B, S, num_heads * D)
    layout_context = lctx.transpose(0, 2, 1, 3).reshape(B, S, num_heads * Dl)
    return context, layout_context


if __name__ == "__main__":
    # config: hidden_size=32, num_attention_heads=4, channel_shrink_ratio=2,
    # position_embedding_type='absolute', attention_probs_dropout_prob=0.0
    B, S, HID, NH, SHRINK = 2, 8, 32, 4, 2

    key = jax.random.PRNGKey(0)
    k_p, k_h, k_l, k_m = jax.random.split(key, 4)

    params = init_params(k_p, HID, NH, SHRINK)
    hidden_states = jax.random.normal(k_h, (B, S, HID), jnp.float32)
    layout_hidden_states = jax.random.normal(k_l, (B, S, HID // SHRINK), jnp.float32)
    # HF-style additive mask: 0 for keep, large-negative for masked keys.
    mask_bits = (jax.random.uniform(k_m, (B, 1, 1, S)) > 0.1).astype(jnp.float32)
    attention_mask = (1.0 - mask_bits) * -1e9

    ref_ctx, ref_lctx = reference_forward(
        params, hidden_states, layout_hidden_states, attention_mask, NH, SHRINK)

    # fp32-operand path (tight correctness check).
    fwd_f32 = jax.jit(functools.partial(
        lilt_self_attention_forward, num_heads=NH, shrink=SHRINK, use_bf16=False))
    context, layout_context = fwd_f32(
        params, hidden_states, layout_hidden_states, attention_mask)
    jax.block_until_ready((context, layout_context))

    assert context.shape == (B, S, HID)
    assert layout_context.shape == (B, S, HID // SHRINK)
    assert jnp.allclose(context, ref_ctx, atol=2e-3, rtol=2e-3)
    assert jnp.allclose(layout_context, ref_lctx, atol=2e-3, rtol=2e-3)

    # Default bf16-operand MXU path (fp32 accumulation) -- looser tolerance.
    fwd_bf16 = jax.jit(functools.partial(
        lilt_self_attention_forward, num_heads=NH, shrink=SHRINK, use_bf16=True))
    ctx_b, lctx_b = fwd_bf16(
        params, hidden_states, layout_hidden_states, attention_mask)
    jax.block_until_ready((ctx_b, lctx_b))
    assert jnp.allclose(ctx_b, ref_ctx, atol=1e-1, rtol=1e-1)
    assert jnp.allclose(lctx_b, ref_lctx, atol=1e-1, rtol=1e-1)

    print("KERNEL_OK")
</pallas_src>

<mosaic_0001>
module attributes {stable_mosaic.version = 11 : i64} {
  func.func @_fused_qkv_kernel(%arg0: i32, %arg1: memref<16x32xf32, #tpu.memory_space<vmem>>, %arg2: memref<32x96xf32, #tpu.memory_space<vmem>>, %arg3: memref<1x96xf32, #tpu.memory_space<vmem>>, %arg4: memref<16x32xf32, #tpu.memory_space<vmem>>, %arg5: memref<16x32xf32, #tpu.memory_space<vmem>>, %arg6: memref<16x32xf32, #tpu.memory_space<vmem>>) attributes {dimension_semantics = [#tpu.dimension_semantics<parallel>], iteration_bounds = array<i64: 1>, scalar_prefetch = 0 : i64, scratch_operands = 0 : i64, tpu.core_type = #tpu.core_type<tc>, window_params = [{transform_indices = @transform_0, window_bounds = array<i64: 16, 32>}, {pipeline_mode = #tpu.pipeline_mode<synchronous>, transform_indices = @transform_1, window_bounds = array<i64: 32, 96>}, {pipeline_mode = #tpu.pipeline_mode<synchronous>, transform_indices = @transform_2, window_bounds = array<i64: 1, 96>}, {transform_indices = @transform_3, window_bounds = array<i64: 16, 32>}, {transform_indices = @transform_4, window_bounds = array<i64: 16, 32>}, {transform_indices = @transform_5, window_bounds = array<i64: 16, 32>}]} {
    %c0 = arith.constant 0 : index
    %c0_0 = arith.constant 0 : index
    %0 = vector.load %arg1[%c0, %c0_0] : memref<16x32xf32, #tpu.memory_space<vmem>>, vector<16x32xf32>
    %c0_1 = arith.constant 0 : index
    %c0_2 = arith.constant 0 : index
    %1 = vector.load %arg2[%c0_1, %c0_2] : memref<32x96xf32, #tpu.memory_space<vmem>>, vector<32x96xf32>
    %cst = arith.constant dense<0.000000e+00> : vector<16x96xf32>
    %2 = tpu.matmul %0, %1, %cst {dimension_numbers = #tpu.dot_dimension_numbers<[1], [0], [0], [1], [0, 0, 1, 1], [], []>} : vector<16x32xf32>, vector<32x96xf32>, vector<16x96xf32> -> vector<16x96xf32>
    %c0_3 = arith.constant 0 : index
    %c0_4 = arith.constant 0 : index
    %3 = vector.load %arg3[%c0_3, %c0_4] : memref<1x96xf32, #tpu.memory_space<vmem>>, vector<1x96xf32>
    %4 = vector.broadcast %3 : vector<1x96xf32> to vector<16x96xf32>
    %5 = arith.addf %2, %4 : vector<16x96xf32>
    %6 = vector.extract_strided_slice %5 {offsets = [0, 0], sizes = [16, 32], strides = [1, 1]} : vector<16x96xf32> to vector<16x32xf32>
    %c0_5 = arith.constant 0 : index
    %c0_6 = arith.constant 0 : index
    %7 = vector.load %arg4[%c0_5, %c0_6] : memref<16x32xf32, #tpu.memory_space<vmem>>, vector<16x32xf32>
    tpu.vector_store %arg4[%c0_5, %c0_6], %6 {strides = array<i32>} : memref<16x32xf32, #tpu.memory_space<vmem>>, vector<16x32xf32>,
    %8 = vector.extract_strided_slice %5 {offsets = [0, 32], sizes = [16, 32], strides = [1, 1]} : vector<16x96xf32> to vector<16x32xf32>
    %c0_7 = arith.constant 0 : index
    %c0_8 = arith.constant 0 : index
    %9 = vector.load %arg5[%c0_7, %c0_8] : memref<16x32xf32, #tpu.memory_space<vmem>>, vector<16x32xf32>
    tpu.vector_store %arg5[%c0_7, %c0_8], %8 {strides = array<i32>} : memref<16x32xf32, #tpu.memory_space<vmem>>, vector<16x32xf32>,
    %10 = vector.extract_strided_slice %5 {offsets = [0, 64], sizes = [16, 32], strides = [1, 1]} : vector<16x96xf32> to vector<16x32xf32>
    %c0_9 = arith.constant 0 : index
    %c0_10 = arith.constant 0 : index
    %11 = vector.load %arg6[%c0_9, %c0_10] : memref<16x32xf32, #tpu.memory_space<vmem>>, vector<16x32xf32>
    tpu.vector_store %arg6[%c0_9, %c0_10], %10 {strides = array<i32>} : memref<16x32xf32, #tpu.memory_space<vmem>>, vector<16x32xf32>,
    return
  }
  func.func @transform_0(%arg0: i32) -> (i32, i32) {
    %c0_i32 = arith.constant 0 : i32
    %c0_i32_0 = arith.constant 0 : i32
    return %arg0, %c0_i32 : i32, i32
  }
  func.func @transform_1(%arg0: i32) -> (i32, i32) {
    %c0_i32 = arith.constant 0 : i32
    %c0_i32_0 = arith.constant 0 : i32
    %c0_i32_1 = arith.constant 0 : i32
    return %c0_i32, %c0_i32_0 : i32, i32
  }
  func.func @transform_2(%arg0: i32) -> (i32, i32) {
    %c0_i32 = arith.constant 0 : i32
    %c0_i32_0 = arith.constant 0 : i32
    %c0_i32_1 = arith.constant 0 : i32
    return %c0_i32, %c0_i32_0 : i32, i32
  }
  func.func @transform_3(%arg0: i32) -> (i32, i32) {
    %c0_i32 = arith.constant 0 : i32
    %c0_i32_0 = arith.constant 0 : i32
    return %arg0, %c0_i32 : i32, i32
  }
  func.func @transform_4(%arg0: i32) -> (i32, i32) {
    %c0_i32 = arith.constant 0 : i32
    %c0_i32_0 = arith.constant 0 : i32
    return %arg0, %c0_i32 : i32, i32
  }
  func.func @transform_5(%arg0: i32) -> (i32, i32) {
    %c0_i32 = arith.constant 0 : i32
    %c0_i32_0 = arith.constant 0 : i32
    return %arg0, %c0_i32 : i32, i32
  }
}

module attributes {stable_mosaic.version = 11 : i64} {
  func.func @_fused_qkv_kernel(%arg0: i32, %arg1: memref<16x16xf32, #tpu.memory_space<vmem>>, %arg2: memref<16x48xf32, #tpu.memory_space<vmem>>, %arg3: memref<1x48xf32, #tpu.memory_space<vmem>>, %arg4: memref<16x16xf32, #tpu.memory_space<vmem>>, %arg5: memref<16x16xf32, #tpu.memory_space<vmem>>, %arg6: memref<16x16xf32, #tpu.memory_space<vmem>>) attributes {dimension_semantics = [#tpu.dimension_semantics<parallel>], iteration_bounds = array<i64: 1>, scalar_prefetch = 0 : i64, scratch_operands = 0 : i64, tpu.core_type = #tpu.core_type<tc>, window_params = [{transform_indices = @transform_0, window_bounds = array<i64: 16, 16>}, {pipeline_mode = #tpu.pipeline_mode<synchronous>, transform_indices = @transform_1, window_bounds = array<i64: 16, 48>}, {pipeline_mode = #tpu.pipeline_mode<synchronous>, transform_indices = @transform_2, window_bounds = array<i64: 1, 48>}, {transform_indices = @transform_3, window_bounds = array<i64: 16, 16>}, {transform_indices = @transform_4, window_bounds = array<i64: 16, 16>}, {transform_indices = @transform_5, window_bounds = array<i64: 16, 16>}]} {
    %c0 = arith.constant 0 : index
    %c0_0 = arith.constant 0 : index
    %0 = vector.load %arg1[%c0, %c0_0] : memref<16x16xf32, #tpu.memory_space<vmem>>, vector<16x16xf32>
    %c0_1 = arith.constant 0 : index
    %c0_2 = arith.constant 0 : index
    %1 = vector.load %arg2[%c0_1, %c0_2] : memref<16x48xf32, #tpu.memory_space<vmem>>, vector<16x48xf32>
    %cst = arith.constant dense<0.000000e+00> : vector<16x48xf32>
    %2 = tpu.matmul %0, %1, %cst {dimension_numbers = #tpu.dot_dimension_numbers<[1], [0], [0], [1], [0, 0, 1, 1], [], []>} : vector<16x16xf32>, vector<16x48xf32>, vector<16x48xf32> -> vector<16x48xf32>
    %c0_3 = arith.constant 0 : index
    %c0_4 = arith.constant 0 : index
    %3 = vector.load %arg3[%c0_3, %c0_4] : memref<1x48xf32, #tpu.memory_space<vmem>>, vector<1x48xf32>
    %4 = vector.broadcast %3 : vector<1x48xf32> to vector<16x48xf32>
    %5 = arith.addf %2, %4 : vector<16x48xf32>
    %6 = vector.extract_strided_slice %5 {offsets = [0, 0], sizes = [16, 16], strides = [1, 1]} : vector<16x48xf32> to vector<16x16xf32>
    %c0_5 = arith.constant 0 : index
    %c0_6 = arith.constant 0 : index
    %7 = vector.load %arg4[%c0_5, %c0_6] : memref<16x16xf32, #tpu.memory_space<vmem>>, vector<16x16xf32>
    tpu.vector_store %arg4[%c0_5, %c0_6], %6 {strides = array<i32>} : memref<16x16xf32, #tpu.memory_space<vmem>>, vector<16x16xf32>,
    %8 = vector.extract_strided_slice %5 {offsets = [0, 16], sizes = [16, 16], strides = [1, 1]} : vector<16x48xf32> to vector<16x16xf32>
    %c0_7 = arith.constant 0 : index
    %c0_8 = arith.constant 0 : index
    %9 = vector.load %arg5[%c0_7, %c0_8] : memref<16x16xf32, #tpu.memory_space<vmem>>, vector<16x16xf32>
    tpu.vector_store %arg5[%c0_7, %c0_8], %8 {strides = array<i32>} : memref<16x16xf32, #tpu.memory_space<vmem>>, vector<16x16xf32>,
    %10 = vector.extract_strided_slice %5 {offsets = [0, 32], sizes = [16, 16], strides = [1, 1]} : vector<16x48xf32> to vector<16x16xf32>
    %c0_9 = arith.constant 0 : index
    %c0_10 = arith.constant 0 : index
    %11 = vector.load %arg6[%c0_9, %c0_10] : memref<16x16xf32, #tpu.memory_space<vmem>>, vector<16x16xf32>
    tpu.vector_store %arg6[%c0_9, %c0_10], %10 {strides = array<i32>} : memref<16x16xf32, #tpu.memory_space<vmem>>, vector<16x16xf32>,
    return
  }
  func.func @transform_0(%arg0: i32) -> (i32, i32) {
    %c0_i32 = arith.constant 0 : i32
    %c0_i32_0 = arith.constant 0 : i32
    return %arg0, %c0_i32 : i32, i32
  }
  func.func @transform_1(%arg0: i32) -> (i32, i32) {
    %c0_i32 = arith.constant 0 : i32
    %c0_i32_0 = arith.constant 0 : i32
    %c0_i32_1 = arith.constant 0 : i32
    return %c0_i32, %c0_i32_0 : i32, i32
  }
  func.func @transform_2(%arg0: i32) -> (i32, i32) {
    %c0_i32 = arith.constant 0 : i32
    %c0_i32_0 = arith.constant 0 : i32
    %c0_i32_1 = arith.constant 0 : i32
    return %c0_i32, %c0_i32_0 : i32, i32
  }
  func.func @transform_3(%arg0: i32) -> (i32, i32) {
    %c0_i32 = arith.constant 0 : i32
    %c0_i32_0 = arith.constant 0 : i32
    return %arg0, %c0_i32 : i32, i32
  }
  func.func @transform_4(%arg0: i32) -> (i32, i32) {
    %c0_i32 = arith.constant 0 : i32
    %c0_i32_0 = arith.constant 0 : i32
    return %arg0, %c0_i32 : i32, i32
  }
  func.func @transform_5(%arg0: i32) -> (i32, i32) {
    %c0_i32 = arith.constant 0 : i32
    %c0_i32_0 = arith.constant 0 : i32
    return %arg0, %c0_i32 : i32, i32
  }
}

module attributes {stable_mosaic.version = 11 : i64} {
  func.func @_lilt_attn_kernel(%arg0: i32, %arg1: i32, %arg2: memref<1x8x32xf32, #tpu.memory_space<vmem>>, %arg3: memref<1x8x32xf32, #tpu.memory_space<vmem>>, %arg4: memref<1x8x32xf32, #tpu.memory_space<vmem>>, %arg5: memref<1x8x16xf32, #tpu.memory_space<vmem>>, %arg6: memref<1x8x16xf32, #tpu.memory_space<vmem>>, %arg7: memref<1x8x16xf32, #tpu.memory_space<vmem>>, %arg8: memref<1x1x8xf32, #tpu.memory_space<vmem>>, %arg9: memref<1x8x32xf32, #tpu.memory_space<vmem>>, %arg10: memref<1x8x16xf32, #tpu.memory_space<vmem>>) attributes {dimension_semantics = [#tpu.dimension_semantics<parallel>, #tpu.dimension_semantics<parallel>], iteration_bounds = array<i64: 2, 1>, scalar_prefetch = 0 : i64, scratch_operands = 0 : i64, tpu.core_type = #tpu.core_type<tc>, window_params = [{transform_indices = @transform_0, window_bounds = array<i64: 1, 8, 32>}, {transform_indices = @transform_1, window_bounds = array<i64: 1, 8, 32>}, {transform_indices = @transform_2, window_bounds = array<i64: 1, 8, 32>}, {transform_indices = @transform_3, window_bounds = array<i64: 1, 8, 16>}, {transform_indices = @transform_4, window_bounds = array<i64: 1, 8, 16>}, {transform_indices = @transform_5, window_bounds = array<i64: 1, 8, 16>}, {transform_indices = @transform_6, window_bounds = array<i64: 1, 1, 8>}, {transform_indices = @transform_7, window_bounds = array<i64: 1, 8, 32>}, {transform_indices = @transform_8, window_bounds = array<i64: 1, 8, 16>}]} {
    %c0 = arith.constant 0 : index
    %c0_0 = arith.constant 0 : index
    %c0_1 = arith.constant 0 : index
    %0 = vector.load %arg2[%c0, %c0_0, %c0_1] : memref<1x8x32xf32, #tpu.memory_space<vmem>>, vector<1x8x32xf32>
    %1 = vector.shape_cast %0 : vector<1x8x32xf32> to vector<8x32xf32>
    %c0_2 = arith.constant 0 : index
    %c0_3 = arith.constant 0 : index
    %c0_4 = arith.constant 0 : index
    %2 = vector.load %arg3[%c0_2, %c0_3, %c0_4] : memref<1x8x32xf32, #tpu.memory_space<vmem>>, vector<1x8x32xf32>
    %3 = vector.shape_cast %2 : vector<1x8x32xf32> to vector<8x32xf32>
    %c0_5 = arith.constant 0 : index
    %c0_6 = arith.constant 0 : index
    %c0_7 = arith.constant 0 : index
    %4 = vector.load %arg4[%c0_5, %c0_6, %c0_7] : memref<1x8x32xf32, #tpu.memory_space<vmem>>, vector<1x8x32xf32>
    %5 = vector.shape_cast %4 : vector<1x8x32xf32> to vector<8x32xf32>
    %c0_8 = arith.constant 0 : index
    %c0_9 = arith.constant 0 : index
    %c0_10 = arith.constant 0 : index
    %6 = vector.load %arg5[%c0_8, %c0_9, %c0_10] : memref<1x8x16xf32, #tpu.memory_space<vmem>>, vector<1x8x16xf32>
    %7 = vector.shape_cast %6 : vector<1x8x16xf32> to vector<8x16xf32>
    %c0_11 = arith.constant 0 : index
    %c0_12 = arith.constant 0 : index
    %c0_13 = arith.constant 0 : index
    %8 = vector.load %arg6[%c0_11, %c0_12, %c0_13] : memref<1x8x16xf32, #tpu.memory_space<vmem>>, vector<1x8x16xf32>
    %9 = vector.shape_cast %8 : vector<1x8x16xf32> to vector<8x16xf32>
    %c0_14 = arith.constant 0 : index
    %c0_15 = arith.constant 0 : index
    %c0_16 = arith.constant 0 : index
    %10 = vector.load %arg7[%c0_14, %c0_15, %c0_16] : memref<1x8x16xf32, #tpu.memory_space<vmem>>, vector<1x8x16xf32>
    %11 = vector.shape_cast %10 : vector<1x8x16xf32> to vector<8x16xf32>
    %c0_17 = arith.constant 0 : index
    %c0_18 = arith.constant 0 : index
    %c0_19 = arith.constant 0 : index
    %12 = vector.load %arg8[%c0_17, %c0_18, %c0_19] : memref<1x1x8xf32, #tpu.memory_space<vmem>>, vector<1x1x8xf32>
    %13 = vector.shape_cast %12 : vector<1x1x8xf32> to vector<1x8xf32>
    %14 = vector.extract_strided_slice %1 {offsets = [0, 0], sizes = [8, 8], strides = [1, 1]} : vector<8x32xf32> to vector<8x8xf32>
    %15 = vector.extract_strided_slice %3 {offsets = [0, 0], sizes = [8, 8], strides = [1, 1]} : vector<8x32xf32> to vector<8x8xf32>
    %16 = vector.extract_strided_slice %7 {offsets = [0, 0], sizes = [8, 4], strides = [1, 1]} : vector<8x16xf32> to vector<8x4xf32>
    %17 = vector.extract_strided_slice %9 {offsets = [0, 0], sizes = [8, 4], strides = [1, 1]} : vector<8x16xf32> to vector<8x4xf32>
    %cst = arith.constant dense<0.000000e+00> : vector<8x8xf32>
    %18 = tpu.matmul %14, %15, %cst {dimension_numbers = #tpu.dot_dimension_numbers<[1], [1], [0], [0], [0, 0, 1, 0], [], []>} : vector<8x8xf32>, vector<8x8xf32>, vector<8x8xf32> -> vector<8x8xf32>
    %cst_20 = arith.constant dense<0.000000e+00> : vector<8x8xf32>
    %19 = tpu.matmul %16, %17, %cst_20 {dimension_numbers = #tpu.dot_dimension_numbers<[1], [1], [0], [0], [0, 0, 1, 0], [], []>} : vector<8x4xf32>, vector<8x4xf32>, vector<8x8xf32> -> vector<8x8xf32>
    %20 = arith.addf %18, %19 : vector<8x8xf32>
    %21 = vector.broadcast %13 : vector<1x8xf32> to vector<8x8xf32>
    %22 = arith.addf %20, %21 : vector<8x8xf32>
    %cst_21 = arith.constant dense<0xFF800000> : vector<8xf32>
    %23 = vector.multi_reduction <maximumf>, %22, %cst_21 [1] : vector<8x8xf32> to vector<8xf32>
    %24 = vector.shape_cast %23 : vector<8xf32> to vector<8x1xf32>
    %25 = vector.broadcast %24 : vector<8x1xf32> to vector<8x8xf32>
    %26 = arith.subf %22, %25 : vector<8x8xf32>
    %27 = math.exp %26 : vector<8x8xf32>
    %cst_22 = arith.constant dense<0.000000e+00> : vector<8xf32>
    %28 = vector.multi_reduction <add>, %27, %cst_22 [1] : vector<8x8xf32> to vector<8xf32>
    %29 = vector.shape_cast %28 : vector<8xf32> to vector<8x1xf32>
    %30 = tpu.reciprocal %29 {approx = true} : vector<8x1xf32> -> vector<8x1xf32>
    %31 = vector.broadcast %30 : vector<8x1xf32> to vector<8x8xf32>
    %32 = arith.mulf %27, %31 : vector<8x8xf32>
    %33 = vector.extract_strided_slice %5 {offsets = [0, 0], sizes = [8, 8], strides = [1, 1]} : vector<8x32xf32> to vector<8x8xf32>
    %cst_23 = arith.constant dense<0.000000e+00> : vector<8x8xf32>
    %34 = tpu.matmul %32, %33, %cst_23 {dimension_numbers = #tpu.dot_dimension_numbers<[1], [0], [0], [1], [0, 0, 1, 1], [], []>} : vector<8x8xf32>, vector<8x8xf32>, vector<8x8xf32> -> vector<8x8xf32>
    %35 = vector.extract_strided_slice %11 {offsets = [0, 0], sizes = [8, 4], strides = [1, 1]} : vector<8x16xf32> to vector<8x4xf32>
    %cst_24 = arith.constant dense<0.000000e+00> : vector<8x4xf32>
    %36 = tpu.matmul %32, %35, %cst_24 {dimension_numbers = #tpu.dot_dimension_numbers<[1], [0], [0], [1], [0, 0, 1, 1], [], []>} : vector<8x8xf32>, vector<8x4xf32>, vector<8x4xf32> -> vector<8x4xf32>
    %37 = vector.extract_strided_slice %1 {offsets = [0, 8], sizes = [8, 8], strides = [1, 1]} : vector<8x32xf32> to vector<8x8xf32>
    %38 = vector.extract_strided_slice %3 {offsets = [0, 8], sizes = [8, 8], strides = [1, 1]} : vector<8x32xf32> to vector<8x8xf32>
    %39 = vector.extract_strided_slice %7 {offsets = [0, 4], sizes = [8, 4], strides = [1, 1]} : vector<8x16xf32> to vector<8x4xf32>
    %40 = vector.extract_strided_slice %9 {offsets = [0, 4], sizes = [8, 4], strides = [1, 1]} : vector<8x16xf32> to vector<8x4xf32>
    %cst_25 = arith.constant dense<0.000000e+00> : vector<8x8xf32>
    %41 = tpu.matmul %37, %38, %cst_25 {dimension_numbers = #tpu.dot_dimension_numbers<[1], [1], [0], [0], [0, 0, 1, 0], [], []>} : vector<8x8xf32>, vector<8x8xf32>, vector<8x8xf32> -> vector<8x8xf32>
    %cst_26 = arith.constant dense<0.000000e+00> : vector<8x8xf32>
    %42 = tpu.matmul %39, %40, %cst_26 {dimension_numbers = #tpu.dot_dimension_numbers<[1], [1], [0], [0], [0, 0, 1, 0], [], []>} : vector<8x4xf32>, vector<8x4xf32>, vector<8x8xf32> -> vector<8x8xf32>
    %43 = arith.addf %41, %42 : vector<8x8xf32>
    %44 = vector.broadcast %13 : vector<1x8xf32> to vector<8x8xf32>
    %45 = arith.addf %43, %44 : vector<8x8xf32>
    %cst_27 = arith.constant dense<0xFF800000> : vector<8xf32>
    %46 = vector.multi_reduction <maximumf>, %45, %cst_27 [1] : vector<8x8xf32> to vector<8xf32>
    %47 = vector.shape_cast %46 : vector<8xf32> to vector<8x1xf32>
    %48 = vector.broadcast %47 : vector<8x1xf32> to vector<8x8xf32>
    %49 = arith.subf %45, %48 : vector<8x8xf32>
    %50 = math.exp %49 : vector<8x8xf32>
    %cst_28 = arith.constant dense<0.000000e+00> : vector<8xf32>
    %51 = vector.multi_reduction <add>, %50, %cst_28 [1] : vector<8x8xf32> to vector<8xf32>
    %52 = vector.shape_cast %51 : vector<8xf32> to vector<8x1xf32>
    %53 = tpu.reciprocal %52 {approx = true} : vector<8x1xf32> -> vector<8x1xf32>
    %54 = vector.broadcast %53 : vector<8x1xf32> to vector<8x8xf32>
    %55 = arith.mulf %50, %54 : vector<8x8xf32>
    %56 = vector.extract_strided_slice %5 {offsets = [0, 8], sizes = [8, 8], strides = [1, 1]} : vector<8x32xf32> to vector<8x8xf32>
    %cst_29 = arith.constant dense<0.000000e+00> : vector<8x8xf32>
    %57 = tpu.matmul %55, %56, %cst_29 {dimension_numbers = #tpu.dot_dimension_numbers<[1], [0], [0], [1], [0, 0, 1, 1], [], []>} : vector<8x8xf32>, vector<8x8xf32>, vector<8x8xf32> -> vector<8x8xf32>
    %58 = vector.extract_strided_slice %11 {offsets = [0, 4], sizes = [8, 4], strides = [1, 1]} : vector<8x16xf32> to vector<8x4xf32>
    %cst_30 = arith.constant dense<0.000000e+00> : vector<8x4xf32>
    %59 = tpu.matmul %55, %58, %cst_30 {dimension_numbers = #tpu.dot_dimension_numbers<[1], [0], [0], [1], [0, 0, 1, 1], [], []>} : vector<8x8xf32>, vector<8x4xf32>, vector<8x4xf32> -> vector<8x4xf32>
    %60 = vector.extract_strided_slice %1 {offsets = [0, 16], sizes = [8, 8], strides = [1, 1]} : vector<8x32xf32> to vector<8x8xf32>
    %61 = vector.extract_strided_slice %3 {offsets = [0, 16], sizes = [8, 8], strides = [1, 1]} : vector<8x32xf32> to vector<8x8xf32>
    %62 = vector.extract_strided_slice %7 {offsets = [0, 8], sizes = [8, 4], strides = [1, 1]} : vector<8x16xf32> to vector<8x4xf32>
    %63 = vector.extract_strided_slice %9 {offsets = [0, 8], sizes = [8, 4], strides = [1, 1]} : vector<8x16xf32> to vector<8x4xf32>
    %cst_31 = arith.constant dense<0.000000e+00> : vector<8x8xf32>
    %64 = tpu.matmul %60, %61, %cst_31 {dimension_numbers = #tpu.dot_dimension_numbers<[1], [1], [0], [0], [0, 0, 1, 0], [], []>} : vector<8x8xf32>, vector<8x8xf32>, vector<8x8xf32> -> vector<8x8xf32>
    %cst_32 = arith.constant dense<0.000000e+00> : vector<8x8xf32>
    %65 = tpu.matmul %62, %63, %cst_32 {dimension_numbers = #tpu.dot_dimension_numbers<[1], [1], [0], [0], [0, 0, 1, 0], [], []>} : vector<8x4xf32>, vector<8x4xf32>, vector<8x8xf32> -> vector<8x8xf32>
    %66 = arith.addf %64, %65 : vector<8x8xf32>
    %67 = vector.broadcast %13 : vector<1x8xf32> to vector<8x8xf32>
    %68 = arith.addf %66, %67 : vector<8x8xf32>
    %cst_33 = arith.constant dense<0xFF800000> : vector<8xf32>
    %69 = vector.multi_reduction <maximumf>, %68, %cst_33 [1] : vector<8x8xf32> to vector<8xf32>
    %70 = vector.shape_cast %69 : vector<8xf32> to vector<8x1xf32>
    %71 = vector.broadcast %70 : vector<8x1xf32> to vector<8x8xf32>
    %72 = arith.subf %68, %71 : vector<8x8xf32>
    %73 = math.exp %72 : vector<8x8xf32>
    %cst_34 = arith.constant dense<0.000000e+00> : vector<8xf32>
    %74 = vector.multi_reduction <add>, %73, %cst_34 [1] : vector<8x8xf32> to vector<8xf32>
    %75 = vector.shape_cast %74 : vector<8xf32> to vector<8x1xf32>
    %76 = tpu.reciprocal %75 {approx = true} : vector<8x1xf32> -> vector<8x1xf32>
    %77 = vector.broadcast %76 : vector<8x1xf32> to vector<8x8xf32>
    %78 = arith.mulf %73, %77 : vector<8x8xf32>
    %79 = vector.extract_strided_slice %5 {offsets = [0, 16], sizes = [8, 8], strides = [1, 1]} : vector<8x32xf32> to vector<8x8xf32>
    %cst_35 = arith.constant dense<0.000000e+00> : vector<8x8xf32>
    %80 = tpu.matmul %78, %79, %cst_35 {dimension_numbers = #tpu.dot_dimension_numbers<[1], [0], [0], [1], [0, 0, 1, 1], [], []>} : vector<8x8xf32>, vector<8x8xf32>, vector<8x8xf32> -> vector<8x8xf32>
    %81 = vector.extract_strided_slice %11 {offsets = [0, 8], sizes = [8, 4], strides = [1, 1]} : vector<8x16xf32> to vector<8x4xf32>
    %cst_36 = arith.constant dense<0.000000e+00> : vector<8x4xf32>
    %82 = tpu.matmul %78, %81, %cst_36 {dimension_numbers = #tpu.dot_dimension_numbers<[1], [0], [0], [1], [0, 0, 1, 1], [], []>} : vector<8x8xf32>, vector<8x4xf32>, vector<8x4xf32> -> vector<8x4xf32>
    %83 = vector.extract_strided_slice %1 {offsets = [0, 24], sizes = [8, 8], strides = [1, 1]} : vector<8x32xf32> to vector<8x8xf32>
    %84 = vector.extract_strided_slice %3 {offsets = [0, 24], sizes = [8, 8], strides = [1, 1]} : vector<8x32xf32> to vector<8x8xf32>
    %85 = vector.extract_strided_slice %7 {offsets = [0, 12], sizes = [8, 4], strides = [1, 1]} : vector<8x16xf32> to vector<8x4xf32>
    %86 = vector.extract_strided_slice %9 {offsets = [0, 12], sizes = [8, 4], strides = [1, 1]} : vector<8x16xf32> to vector<8x4xf32>
    %cst_37 = arith.constant dense<0.000000e+00> : vector<8x8xf32>
    %87 = tpu.matmul %83, %84, %cst_37 {dimension_numbers = #tpu.dot_dimension_numbers<[1], [1], [0], [0], [0, 0, 1, 0], [], []>} : vector<8x8xf32>, vector<8x8xf32>, vector<8x8xf32> -> vector<8x8xf32>
    %cst_38 = arith.constant dense<0.000000e+00> : vector<8x8xf32>
    %88 = tpu.matmul %85, %86, %cst_38 {dimension_numbers = #tpu.dot_dimension_numbers<[1], [1], [0], [0], [0, 0, 1, 0], [], []>} : vector<8x4xf32>, vector<8x4xf32>, vector<8x8xf32> -> vector<8x8xf32>
    %89 = arith.addf %87, %88 : vector<8x8xf32>
    %90 = vector.broadcast %13 : vector<1x8xf32> to vector<8x8xf32>
    %91 = arith.addf %89, %90 : vector<8x8xf32>
    %cst_39 = arith.constant dense<0xFF800000> : vector<8xf32>
    %92 = vector.multi_reduction <maximumf>, %91, %cst_39 [1] : vector<8x8xf32> to vector<8xf32>
    %93 = vector.shape_cast %92 : vector<8xf32> to vector<8x1xf32>
    %94 = vector.broadcast %93 : vector<8x1xf32> to vector<8x8xf32>
    %95 = arith.subf %91, %94 : vector<8x8xf32>
    %96 = math.exp %95 : vector<8x8xf32>
    %cst_40 = arith.constant dense<0.000000e+00> : vector<8xf32>
    %97 = vector.multi_reduction <add>, %96, %cst_40 [1] : vector<8x8xf32> to vector<8xf32>
    %98 = vector.shape_cast %97 : vector<8xf32> to vector<8x1xf32>
    %99 = tpu.reciprocal %98 {approx = true} : vector<8x1xf32> -> vector<8x1xf32>
    %100 = vector.broadcast %99 : vector<8x1xf32> to vector<8x8xf32>
    %101 = arith.mulf %96, %100 : vector<8x8xf32>
    %102 = vector.extract_strided_slice %5 {offsets = [0, 24], sizes = [8, 8], strides = [1, 1]} : vector<8x32xf32> to vector<8x8xf32>
    %cst_41 = arith.constant dense<0.000000e+00> : vector<8x8xf32>
    %103 = tpu.matmul %101, %102, %cst_41 {dimension_numbers = #tpu.dot_dimension_numbers<[1], [0], [0], [1], [0, 0, 1, 1], [], []>} : vector<8x8xf32>, vector<8x8xf32>, vector<8x8xf32> -> vector<8x8xf32>
    %104 = vector.extract_strided_slice %11 {offsets = [0, 12], sizes = [8, 4], strides = [1, 1]} : vector<8x16xf32> to vector<8x4xf32>
    %cst_42 = arith.constant dense<0.000000e+00> : vector<8x4xf32>
    %105 = tpu.matmul %101, %104, %cst_42 {dimension_numbers = #tpu.dot_dimension_numbers<[1], [0], [0], [1], [0, 0, 1, 1], [], []>} : vector<8x8xf32>, vector<8x4xf32>, vector<8x4xf32> -> vector<8x4xf32>
    %106 = tpu.concatenate %34, %57, %80, %103 in 1 : vector<8x8xf32>, vector<8x8xf32>, vector<8x8xf32>, vector<8x8xf32> -> vector<8x32xf32>
    %c0_43 = arith.constant 0 : index
    %c0_44 = arith.constant 0 : index
    %c0_45 = arith.constant 0 : index
    %107 = vector.load %arg9[%c0_43, %c0_44, %c0_45] : memref<1x8x32xf32, #tpu.memory_space<vmem>>, vector<1x8x32xf32>
    %108 = vector.shape_cast %107 : vector<1x8x32xf32> to vector<8x32xf32>
    %109 = vector.shape_cast %106 : vector<8x32xf32> to vector<1x8x32xf32>
    tpu.vector_store %arg9[%c0_43, %c0_44, %c0_45], %109 {strides = array<i32>} : memref<1x8x32xf32, #tpu.memory_space<vmem>>, vector<1x8x32xf32>,
    %110 = tpu.concatenate %36, %59, %82, %105 in 1 : vector<8x4xf32>, vector<8x4xf32>, vector<8x4xf32>, vector<8x4xf32> -> vector<8x16xf32>
    %c0_46 = arith.constant 0 : index
    %c0_47 = arith.constant 0 : index
    %c0_48 = arith.constant 0 : index
    %111 = vector.load %arg10[%c0_46, %c0_47, %c0_48] : memref<1x8x16xf32, #tpu.memory_space<vmem>>, vector<1x8x16xf32>
    %112 = vector.shape_cast %111 : vector<1x8x16xf32> to vector<8x16xf32>
    %113 = vector.shape_cast %110 : vector<8x16xf32> to vector<1x8x16xf32>
    tpu.vector_store %arg10[%c0_46, %c0_47, %c0_48], %113 {strides = array<i32>} : memref<1x8x16xf32, #tpu.memory_space<vmem>>, vector<1x8x16xf32>,
    return
  }
  func.func @transform_0(%arg0: i32, %arg1: i32) -> (i32, i32, i32) {
    %c0_i32 = arith.constant 0 : i32
    %c0_i32_0 = arith.constant 0 : i32
    return %arg0, %arg1, %c0_i32 : i32, i32, i32
  }
  func.func @transform_1(%arg0: i32, %arg1: i32) -> (i32, i32, i32) {
    %c0_i32 = arith.constant 0 : i32
    %c0_i32_0 = arith.constant 0 : i32
    %c0_i32_1 = arith.constant 0 : i32
    return %arg0, %c0_i32, %c0_i32_0 : i32, i32, i32
  }
  func.func @transform_2(%arg0: i32, %arg1: i32) -> (i32, i32, i32) {
    %c0_i32 = arith.constant 0 : i32
    %c0_i32_0 = arith.constant 0 : i32
    %c0_i32_1 = arith.constant 0 : i32
    return %arg0, %c0_i32, %c0_i32_0 : i32, i32, i32
  }
  func.func @transform_3(%arg0: i32, %arg1: i32) -> (i32, i32, i32) {
    %c0_i32 = arith.constant 0 : i32
    %c0_i32_0 = arith.constant 0 : i32
    return %arg0, %arg1, %c0_i32 : i32, i32, i32
  }
  func.func @transform_4(%arg0: i32, %arg1: i32) -> (i32, i32, i32) {
    %c0_i32 = arith.constant 0 : i32
    %c0_i32_0 = arith.constant 0 : i32
    %c0_i32_1 = arith.constant 0 : i32
    return %arg0, %c0_i32, %c0_i32_0 : i32, i32, i32
  }
  func.func @transform_5(%arg0: i32, %arg1: i32) -> (i32, i32, i32) {
    %c0_i32 = arith.constant 0 : i32
    %c0_i32_0 = arith.constant 0 : i32
    %c0_i32_1 = arith.constant 0 : i32
    return %arg0, %c0_i32, %c0_i32_0 : i32, i32, i32
  }
  func.func @transform_6(%arg0: i32, %arg1: i32) -> (i32, i32, i32) {
    %c0_i32 = arith.constant 0 : i32
    %c0_i32_0 = arith.constant 0 : i32
    %c0_i32_1 = arith.constant 0 : i32
    return %arg0, %c0_i32, %c0_i32_0 : i32, i32, i32
  }
  func.func @transform_7(%arg0: i32, %arg1: i32) -> (i32, i32, i32) {
    %c0_i32 = arith.constant 0 : i32
    %c0_i32_0 = arith.constant 0 : i32
    return %arg0, %arg1, %c0_i32 : i32, i32, i32
  }
  func.func @transform_8(%arg0: i32, %arg1: i32) -> (i32, i32, i32) {
    %c0_i32 = arith.constant 0 : i32
    %c0_i32_0 = arith.constant 0 : i32
    return %arg0, %arg1, %c0_i32 : i32, i32, i32
  }
}

</mosaic_0001>

<llo_original>
// kernel: lilt_self_attention_forward.3
$region0: #{lilt_self_attention_forward.3}
  #allocation0 [shape = 'u32[]', space=smem, size = 0x4, offset = 0x4, fixed_abs, tag = 'smem constant byte address 0x4 - core index']
  #allocation1 [shape = 'u32[144,128]{1,0:T(1,128)}', space=vmem, size = 0x12000, scoped, tag = 'internal scratch']
  %s0 = inlined_call_operand.hbm [shape: f32[16,32], index: 0, kind: input, shape index: {}]
  %s1 = inlined_call_operand.hbm [shape: f32[32,96], index: 1, kind: input, shape index: {}]
  %s2 = inlined_call_operand.hbm [shape: f32[1,96], index: 2, kind: input, shape index: {}]
  %s3 = inlined_call_operand.hbm [shape: f32[16,32], index: 3, kind: output, shape index: {0}]
  %s4 = inlined_call_operand.hbm [shape: f32[16,32], index: 4, kind: output, shape index: {1}]
  %s5 = inlined_call_operand.hbm [shape: f32[16,32], index: 5, kind: output, shape index: {2}]
  %6 = xla_tuple %s3, %s4, %s5
  %s7 = sld [smem:[#allocation0]]
  $region50: #{lilt_self_attention_forward.3} parent=0
    _
  %s9 = ssub.s32 1, %s7
  %s10 = scalar_select 0, %s9, %s7
  $region1: #{lilt_self_attention_forward.3} parent=0
    #allocation2 [shape = 'u8[8192]{0}', space=vmem, size = 0x2000, scoped, tag = 'input window, operand 0, single buffered']
    #allocation3 [shape = 's32[1]{0}', space=sflag, size = 0x4, scoped, tag = 'scoped memory for lilt_self_attention_forward.3']
    #allocation4 [shape = 's32[1]{0}', space=sflag, size = 0x4, scoped, tag = 'scoped memory for lilt_self_attention_forward.3']
    #allocation5 [shape = 'u8[16384]{0}', space=vmem, size = 0x4000, scoped, tag = 'input window, operand 1, single buffered']
    #allocation6 [shape = 's32[1]{0}', space=sflag, size = 0x4, scoped, tag = 'scoped memory for lilt_self_attention_forward.3']
    #allocation7 [shape = 'u8[512]{0}', space=vmem, size = 0x400, scoped, tag = 'input window, operand 2, single buffered']
    #allocation8 [shape = 'u8[8192]{0}', space=vmem, size = 0x2000, scoped, tag = 'output window, operand 0, single buffered']
    #allocation9 [shape = 'u8[8192]{0}', space=vmem, size = 0x2000, scoped, tag = 'output window, operand 1, single buffered']
    #allocation10 [shape = 's32[1]{0}', space=sflag, size = 0x4, scoped, tag = 'scoped memory for lilt_self_attention_forward.3']
    #allocation11 [shape = 'u8[8192]{0}', space=vmem, size = 0x2000, scoped, tag = 'output window, operand 2, single buffered']
    %11 = vsyncpa [#allocation3], 0
    %12 = vsyncpa [#allocation6], 0
    %13 = vsyncpa [#allocation4], 0
    %14 = vsyncpa [#allocation10], 0
    // Predicated region
    $region2: #{lilt_self_attention_forward.3} parent=1 // pred_check
      _
    $region3: #{lilt_self_attention_forward.3} parent=1 // pred_check_branch
      %16 = sbr.rel (0) target = $region5
    $region4: #{lilt_self_attention_forward.3} parent=1 // pred_region
      %s18 = ssub.s32 256, 256
      %19 = vsyncadd [#allocation3], %s18
      %s20 = sshll.u32 [#allocation2], 4
      %s21 = int_to_ptr.vmem [resolvable:$true] %s20
      %26 = dma.hbm_to_vmem [thread:$0]  %s0, 256, %s21, [#allocation3], 128, 128, 8
    $region5: #{lilt_self_attention_forward.3} parent=1 // pred_fallthru
      _
    // Predicated region
    $region6: #{lilt_self_attention_forward.3} parent=1 // pred_check
      _
    $region7: #{lilt_self_attention_forward.3} parent=1 // pred_check_branch
      %28 = sbr.rel (0) target = $region9
    $region8: #{lilt_self_attention_forward.3} parent=1 // pred_region
      %s30 = ssub.s32 512, 512
      %31 = vsyncadd [#allocation6], %s30
      %s32 = sshll.u32 [#allocation5], 4
      %s33 = int_to_ptr.vmem [resolvable:$true] %s32
      %38 = dma.hbm_to_vmem [thread:$0]  %s1, 512, %s33, [#allocation6], 128, 128, 8
    $region9: #{lilt_self_attention_forward.3} parent=1 // pred_fallthru
      _
    // Predicated region
    $region10: #{lilt_self_attention_forward.3} parent=1 // pred_check
      _
    $region11: #{lilt_self_attention_forward.3} parent=1 // pred_check_branch
      %40 = sbr.rel (0) target = $region13
    $region12: #{lilt_self_attention_forward.3} parent=1 // pred_region
      %s42 = ssub.s32 16, 16
      %43 = vsyncadd [#allocation6], %s42
      %s45 = sshll.u32 [#allocation7], 4
      %s46 = int_to_ptr.vmem [resolvable:$true] %s45
      %48 = dma.hbm_to_vmem [thread:$0]  %s2, 16, %s46, [#allocation6]
    $region13: #{lilt_self_attention_forward.3} parent=1 // pred_fallthru
      _
    // Predicated region
    $region14: #{lilt_self_attention_forward.3} parent=1 // pred_check
      _
    $region15: #{lilt_self_attention_forward.3} parent=1 // pred_check_branch
      %50 = sbr.rel (0) target = $region17
    $region16: #{lilt_self_attention_forward.3} parent=1 // pred_region
      %51 = dma.done [#allocation3], 256
    $region17: #{lilt_self_attention_forward.3} parent=1 // pred_fallthru
      _
    // Predicated region
    $region18: #{lilt_self_attention_forward.3} parent=1 // pred_check
      _
    $region19: #{lilt_self_attention_forward.3} parent=1 // pred_check_branch
      %53 = sbr.rel (0) target = $region21
    $region20: #{lilt_self_attention_forward.3} parent=1 // pred_region
      %54 = dma.done [#allocation6], 512
    $region21: #{lilt_self_attention_forward.3} parent=1 // pred_fallthru
      _
    // Predicated region
    $region22: #{lilt_self_attention_forward.3} parent=1 // pred_check
      _
    $region23: #{lilt_self_attention_forward.3} parent=1 // pred_check_branch
      %56 = sbr.rel (0) target = $region25
    $region24: #{lilt_self_attention_forward.3} parent=1 // pred_region
      %57 = dma.done [#allocation6], 16
    $region25: #{lilt_self_attention_forward.3} parent=1 // pred_fallthru
      _
    %v58 = vld [vmem:[#allocation2] sm:$0xff]
    %v59 = vld [vmem:[#allocation2 + $0x8] sm:$0xff]
    %v60 = vld [vmem:[#allocation5] sm:$0xff]
    %v61 = vld [vmem:[#allocation5 + $0x8] sm:$0xff]
    %v62 = vld [vmem:[#allocation5 + $0x10] sm:$0xff]
    %v63 = vld [vmem:[#allocation5 + $0x18] sm:$0xff]
    %v64 = vld [vmem:[#allocation7] sm:$0x1]
    %v66 = vlaneseq
    %v67 = vshrl.u32 %v66, 7
    %v68 = vsub.s32 0, %v67
    %v69 = vrot.slane %v64, %v68
    %vm71 = vcmask 261120
    %v73 = vsel %vm71, %v58, 0
    %v76 = vsel %vm71, %v59, 0
    %78 = vmatprep.subr.mxu0 0.0
    %79 = vmatpush1.msra.mxu0 %v60
    %80 = vmatprep.subr.mxu0 0.0
    %81 = vmatpush1.msra.mxu0 %v61
    %82 = vmatprep.subr.mxu0 0.0
    %83 = vmatpush1.msra.mxu0 %v62
    %84 = vmatprep.subr.mxu0 0.0
    %85 = vmatpush1.msra.mxu0 %v63
    %86 = vmatprep.subr.mxu0 0.0
    %87 = vmatpush1.msra.mxu0 0.0
    %88 = vmatprep.subr.mxu0 0.0
    %89 = vmatpush1.msra.mxu0 0.0
    %90 = vmatprep.subr.mxu0 0.0
    %91 = vmatpush1.msra.mxu0 0.0
    %92 = vmatprep.subr.mxu0 0.0
    %93 = vmatpush1.msra.mxu0 0.0
    %94 = vmatprep.subr.mxu0 0.0
    %95 = vmatpush1.msra.mxu0 0.0
    %96 = vmatprep.subr.mxu0 0.0
    %97 = vmatpush1.msra.mxu0 0.0
    %98 = vmatprep.subr.mxu0 0.0
    %99 = vmatpush1.msra.mxu0 0.0
    %100 = vmatprep.subr.mxu0 0.0
    %101 = vmatpush1.msra.mxu0 0.0
    %102 = vmatprep.subr.mxu0 0.0
    %103 = vmatpush1.msra.mxu0 0.0
    %104 = vmatprep.subr.mxu0 0.0
    %105 = vmatpush1.msra.mxu0 0.0
    %106 = vmatprep.subr.mxu0 0.0
    %107 = vmatpush1.msra.mxu0 0.0
    %108 = vmatprep.subr.mxu0 0.0
    %109 = vmatpush1.msra.mxu0 0.0
    %110 = vmatprep.subr.mxu0 0.0
    %111 = vmatpush1.msra.mxu0 0.0
    %112 = vmatprep.subr.mxu0 0.0
    %113 = vmatpush1.msra.mxu0 0.0
    %114 = vmatprep.subr.mxu0 0.0
    %115 = vmatpush1.msra.mxu0 0.0
    %116 = vmatprep.subr.mxu0 0.0
    %117 = vmatpush1.msra.mxu0 0.0
    %118 = vmatprep.subr.mxu0 0.0
    %119 = vmatpush1.msra.mxu0 0.0
    %120 = vmatprep.subr.mxu0 0.0
    %121 = vmatpush1.msra.mxu0 0.0
    %122 = vmatprep.subr.mxu0 0.0
    %123 = vmatpush1.msra.mxu0 0.0
    %124 = vmatprep.subr.mxu0 0.0
    %125 = vmatpush1.msra.mxu0 0.0
    %126 = vmatprep.subr.mxu0 0.0
    %127 = vmatpush1.msra.mxu0 0.0
    %128 = vmatprep.subr.mxu0 0.0
    %129 = vmatpush1.msra.mxu0 0.0
    %130 = vmatprep.subr.mxu0 0.0
    %131 = vmatpush1.msra.mxu0 0.0
    %132 = vmatprep.subr.mxu0 0.0
    %133 = vmatpush1.msra.mxu0 0.0
    %134 = vmatprep.subr.mxu0 0.0
    %135 = vmatpush1.msra.mxu0 0.0
    %136 = vmatprep.subr.mxu0 0.0
    %137 = vmatpush1.msra.mxu0 0.0
    %138 = vmatprep.subr.mxu0 0.0
    %139 = vmatpush1.msra.mxu0 0.0
    %140 = vmatprep.subr.mxu0 0.0
    %141 = vmatpush1.msra.mxu0 0.0
    %142 = vmatprep.mubr.f32.mxu0 0.0
    %143 = vmatmul.mubr.f32.gmra.mrb[0].mxu0 %v73
    %v144 = vpop.f32.mrb[0].mxu0
    %v145 = vadd.f32 %v69, %v144
    %v146 = vpop.f32.mrb[0].mxu0
    %147 = vmatprep.mubr.f32.mxu0 0.0
    %148 = vmatmul.mubr.f32.gmra.mrb[0].mxu0 %v76
    %v149 = vpop.f32.mrb[0].mxu0
    %v150 = vadd.f32 %v69, %v149
    %v151 = vpop.f32.mrb[0].mxu0
    %152 = vdwg.mxu0
    %153 = vst.msk [vmem:[#allocation8] sm:$0xff] %vm71, %v145
    %154 = vst.msk [vmem:[#allocation8 + $0x8] sm:$0xff] %vm71, %v150
    %157 = vrot.lane.b32.xlu0 %v145, 96
    %v158 = vpop.permute.xlu0 %157
    %159 = vrot.lane.b32.xlu0 %v150, 96
    %v160 = vpop.permute.xlu0 %159
    %163 = vst.msk [vmem:[#allocation9] sm:$0xff] %vm71, %v158
    %164 = vst.msk [vmem:[#allocation9 + $0x8] sm:$0xff] %vm71, %v160
    %165 = vrot.lane.b32.xlu0 %v145, 64
    %v166 = vpop.permute.xlu0 %165
    %167 = vrot.lane.b32.xlu0 %v150, 64
    %v168 = vpop.permute.xlu0 %167
    %171 = vst.msk [vmem:[#allocation11] sm:$0xff] %vm71, %v166
    %172 = vst.msk [vmem:[#allocation11 + $0x8] sm:$0xff] %vm71, %v168
    // Predicated region
    $region26: #{lilt_self_attention_forward.3} parent=1 // pred_check
      _
    $region27: #{lilt_self_attention_forward.3} parent=1 // pred_check_branch
      %174 = sbr.rel (0) target = $region29
    $region28: #{lilt_self_attention_forward.3} parent=1 // pred_region
      %s176 = ssub.s32 256, 256
      %177 = vsyncadd [#allocation4], %s176
      %s178 = sshll.u32 [#allocation8], 4
      %s179 = int_to_ptr.vmem [resolvable:$true] %s178
      %184 = dma.vmem_to_hbm [thread:$0]  %s179, 256, %s3, [#allocation4], 128, 128, 8
    $region29: #{lilt_self_attention_forward.3} parent=1 // pred_fallthru
      _
    // Predicated region
    $region30: #{lilt_self_attention_forward.3} parent=1 // pred_check
      _
    $region31: #{lilt_self_attention_forward.3} parent=1 // pred_check_branch
      %186 = sbr.rel (0) target = $region33
    $region32: #{lilt_self_attention_forward.3} parent=1 // pred_region
      %s188 = ssub.s32 256, 256
      %189 = vsyncadd [#allocation10], %s188
      %s190 = sshll.u32 [#allocation9], 4
      %s191 = int_to_ptr.vmem [resolvable:$true] %s190
      %196 = dma.vmem_to_hbm [thread:$0]  %s191, 256, %s4, [#allocation10], 128, 128, 8
    $region33: #{lilt_self_attention_forward.3} parent=1 // pred_fallthru
      _
    // Predicated region
    $region34: #{lilt_self_attention_forward.3} parent=1 // pred_check
      _
    $region35: #{lilt_self_attention_forward.3} parent=1 // pred_check_branch
      %198 = sbr.rel (0) target = $region37
    $region36: #{lilt_self_attention_forward.3} parent=1 // pred_region
      %s200 = ssub.s32 256, 256
      %201 = vsyncadd [#allocation10], %s200
      %s202 = sshll.u32 [#allocation11], 4
      %s203 = int_to_ptr.vmem [resolvable:$true] %s202
      %208 = dma.vmem_to_hbm [thread:$0]  %s203, 256, %s5, [#allocation10], 128, 128, 8
    $region37: #{lilt_self_attention_forward.3} parent=1 // pred_fallthru
      _
    // Predicated region
    $region38: #{lilt_self_attention_forward.3} parent=1 // pred_check
      _
    $region39: #{lilt_self_attention_forward.3} parent=1 // pred_check_branch
      %210 = sbr.rel (0) target = $region41
    $region40: #{lilt_self_attention_forward.3} parent=1 // pred_region
      %211 = dma.done [#allocation4], 256
    $region41: #{lilt_self_attention_forward.3} parent=1 // pred_fallthru
      _
    // Predicated region
    $region42: #{lilt_self_attention_forward.3} parent=1 // pred_check
      _
    $region43: #{lilt_self_attention_forward.3} parent=1 // pred_check_branch
      %213 = sbr.rel (0) target = $region45
    $region44: #{lilt_self_attention_forward.3} parent=1 // pred_region
      %214 = dma.done [#allocation10], 256
    $region45: #{lilt_self_attention_forward.3} parent=1 // pred_fallthru
      _
    // Predicated region
    $region46: #{lilt_self_attention_forward.3} parent=1 // pred_check
      _
    $region47: #{lilt_self_attention_forward.3} parent=1 // pred_check_branch
      %216 = sbr.rel (0) target = $region49
    $region48: #{lilt_self_attention_forward.3} parent=1 // pred_region
      %217 = dma.done [#allocation10], 256
    $region49: #{lilt_self_attention_forward.3} parent=1 // pred_fallthru
      _
    %218 = vsyncpa [#allocation3], 1
    %219 = vsyncpa [#allocation6], 1
    %220 = vsyncpa [#allocation4], 1
    %221 = vsyncpa [#allocation10], 1

// kernel: lilt_self_attention_forward.4
$region0: #{lilt_self_attention_forward.4}
  #allocation0 [shape = 'u32[]', space=smem, size = 0x4, offset = 0x4, fixed_abs, tag = 'smem constant byte address 0x4 - core index']
  #allocation1 [shape = 'u32[144,128]{1,0:T(1,128)}', space=vmem, size = 0x12000, scoped, tag = 'internal scratch']
  %s0 = inlined_call_operand.hbm [shape: f32[16,16], index: 0, kind: input, shape index: {}]
  %s1 = inlined_call_operand.hbm [shape: f32[16,48], index: 1, kind: input, shape index: {}]
  %s2 = inlined_call_operand.hbm [shape: f32[1,48], index: 2, kind: input, shape index: {}]
  %s3 = inlined_call_operand.hbm [shape: f32[16,16], index: 3, kind: output, shape index: {0}]
  %s4 = inlined_call_operand.hbm [shape: f32[16,16], index: 4, kind: output, shape index: {1}]
  %s5 = inlined_call_operand.hbm [shape: f32[16,16], index: 5, kind: output, shape index: {2}]
  %6 = xla_tuple %s3, %s4, %s5
  %s7 = sld [smem:[#allocation0]]
  $region50: #{lilt_self_attention_forward.4} parent=0
    _
  %s9 = ssub.s32 1, %s7
  %s10 = scalar_select 0, %s9, %s7
  $region1: #{lilt_self_attention_forward.4} parent=0
    #allocation2 [shape = 'u8[8192]{0}', space=vmem, size = 0x2000, scoped, tag = 'input window, operand 0, single buffered']
    #allocation3 [shape = 's32[1]{0}', space=sflag, size = 0x4, scoped, tag = 'scoped memory for lilt_self_attention_forward.4']
    #allocation4 [shape = 's32[1]{0}', space=sflag, size = 0x4, scoped, tag = 'scoped memory for lilt_self_attention_forward.4']
    #allocation5 [shape = 'u8[8192]{0}', space=vmem, size = 0x2000, scoped, tag = 'input window, operand 1, single buffered']
    #allocation6 [shape = 's32[1]{0}', space=sflag, size = 0x4, scoped, tag = 'scoped memory for lilt_self_attention_forward.4']
    #allocation7 [shape = 'u8[512]{0}', space=vmem, size = 0x400, scoped, tag = 'input window, operand 2, single buffered']
    #allocation8 [shape = 'u8[8192]{0}', space=vmem, size = 0x2000, scoped, tag = 'output window, operand 0, single buffered']
    #allocation9 [shape = 'u8[8192]{0}', space=vmem, size = 0x2000, scoped, tag = 'output window, operand 1, single buffered']
    #allocation10 [shape = 's32[1]{0}', space=sflag, size = 0x4, scoped, tag = 'scoped memory for lilt_self_attention_forward.4']
    #allocation11 [shape = 'u8[8192]{0}', space=vmem, size = 0x2000, scoped, tag = 'output window, operand 2, single buffered']
    %11 = vsyncpa [#allocation3], 0
    %12 = vsyncpa [#allocation6], 0
    %13 = vsyncpa [#allocation4], 0
    %14 = vsyncpa [#allocation10], 0
    // Predicated region
    $region2: #{lilt_self_attention_forward.4} parent=1 // pred_check
      _
    $region3: #{lilt_self_attention_forward.4} parent=1 // pred_check_branch
      %16 = sbr.rel (0) target = $region5
    $region4: #{lilt_self_attention_forward.4} parent=1 // pred_region
      %s18 = ssub.s32 256, 256
      %19 = vsyncadd [#allocation3], %s18
      %s20 = sshll.u32 [#allocation2], 4
      %s21 = int_to_ptr.vmem [resolvable:$true] %s20
      %26 = dma.hbm_to_vmem [thread:$0]  %s0, 256, %s21, [#allocation3], 128, 128, 8
    $region5: #{lilt_self_attention_forward.4} parent=1 // pred_fallthru
      _
    // Predicated region
    $region6: #{lilt_self_attention_forward.4} parent=1 // pred_check
      _
    $region7: #{lilt_self_attention_forward.4} parent=1 // pred_check_branch
      %28 = sbr.rel (0) target = $region9
    $region8: #{lilt_self_attention_forward.4} parent=1 // pred_region
      %s30 = ssub.s32 256, 256
      %31 = vsyncadd [#allocation6], %s30
      %s32 = sshll.u32 [#allocation5], 4
      %s33 = int_to_ptr.vmem [resolvable:$true] %s32
      %38 = dma.hbm_to_vmem [thread:$0]  %s1, 256, %s33, [#allocation6], 128, 128, 8
    $region9: #{lilt_self_attention_forward.4} parent=1 // pred_fallthru
      _
    // Predicated region
    $region10: #{lilt_self_attention_forward.4} parent=1 // pred_check
      _
    $region11: #{lilt_self_attention_forward.4} parent=1 // pred_check_branch
      %40 = sbr.rel (0) target = $region13
    $region12: #{lilt_self_attention_forward.4} parent=1 // pred_region
      %s42 = ssub.s32 16, 16
      %43 = vsyncadd [#allocation6], %s42
      %s45 = sshll.u32 [#allocation7], 4
      %s46 = int_to_ptr.vmem [resolvable:$true] %s45
      %48 = dma.hbm_to_vmem [thread:$0]  %s2, 16, %s46, [#allocation6]
    $region13: #{lilt_self_attention_forward.4} parent=1 // pred_fallthru
      _
    // Predicated region
    $region14: #{lilt_self_attention_forward.4} parent=1 // pred_check
      _
    $region15: #{lilt_self_attention_forward.4} parent=1 // pred_check_branch
      %50 = sbr.rel (0) target = $region17
    $region16: #{lilt_self_attention_forward.4} parent=1 // pred_region
      %51 = dma.done [#allocation3], 256
    $region17: #{lilt_self_attention_forward.4} parent=1 // pred_fallthru
      _
    // Predicated region
    $region18: #{lilt_self_attention_forward.4} parent=1 // pred_check
      _
    $region19: #{lilt_self_attention_forward.4} parent=1 // pred_check_branch
      %53 = sbr.rel (0) target = $region21
    $region20: #{lilt_self_attention_forward.4} parent=1 // pred_region
      %54 = dma.done [#allocation6], 256
    $region21: #{lilt_self_attention_forward.4} parent=1 // pred_fallthru
      _
    // Predicated region
    $region22: #{lilt_self_attention_forward.4} parent=1 // pred_check
      _
    $region23: #{lilt_self_attention_forward.4} parent=1 // pred_check_branch
      %56 = sbr.rel (0) target = $region25
    $region24: #{lilt_self_attention_forward.4} parent=1 // pred_region
      %57 = dma.done [#allocation6], 16
    $region25: #{lilt_self_attention_forward.4} parent=1 // pred_fallthru
      _
    %v58 = vld [vmem:[#allocation2] sm:$0xff]
    %v59 = vld [vmem:[#allocation2 + $0x8] sm:$0xff]
    %v60 = vld [vmem:[#allocation5] sm:$0xff]
    %v61 = vld [vmem:[#allocation5 + $0x8] sm:$0xff]
    %v62 = vld [vmem:[#allocation7] sm:$0x1]
    %v64 = vlaneseq
    %v65 = vshrl.u32 %v64, 7
    %v66 = vsub.s32 0, %v65
    %v67 = vrot.slane %v62, %v66
    %vm69 = vcmask 130048
    %v71 = vsel %vm69, %v58, 0
    %v74 = vsel %vm69, %v59, 0
    %76 = vmatprep.subr.mxu0 0.0
    %77 = vmatpush1.msra.mxu0 %v60
    %78 = vmatprep.subr.mxu0 0.0
    %79 = vmatpush1.msra.mxu0 %v61
    %80 = vmatprep.subr.mxu0 0.0
    %81 = vmatpush1.msra.mxu0 0.0
    %82 = vmatprep.subr.mxu0 0.0
    %83 = vmatpush1.msra.mxu0 0.0
    %84 = vmatprep.subr.mxu0 0.0
    %85 = vmatpush1.msra.mxu0 0.0
    %86 = vmatprep.subr.mxu0 0.0
    %87 = vmatpush1.msra.mxu0 0.0
    %88 = vmatprep.subr.mxu0 0.0
    %89 = vmatpush1.msra.mxu0 0.0
    %90 = vmatprep.subr.mxu0 0.0
    %91 = vmatpush1.msra.mxu0 0.0
    %92 = vmatprep.subr.mxu0 0.0
    %93 = vmatpush1.msra.mxu0 0.0
    %94 = vmatprep.subr.mxu0 0.0
    %95 = vmatpush1.msra.mxu0 0.0
    %96 = vmatprep.subr.mxu0 0.0
    %97 = vmatpush1.msra.mxu0 0.0
    %98 = vmatprep.subr.mxu0 0.0
    %99 = vmatpush1.msra.mxu0 0.0
    %100 = vmatprep.subr.mxu0 0.0
    %101 = vmatpush1.msra.mxu0 0.0
    %102 = vmatprep.subr.mxu0 0.0
    %103 = vmatpush1.msra.mxu0 0.0
    %104 = vmatprep.subr.mxu0 0.0
    %105 = vmatpush1.msra.mxu0 0.0
    %106 = vmatprep.subr.mxu0 0.0
    %107 = vmatpush1.msra.mxu0 0.0
    %108 = vmatprep.subr.mxu0 0.0
    %109 = vmatpush1.msra.mxu0 0.0
    %110 = vmatprep.subr.mxu0 0.0
    %111 = vmatpush1.msra.mxu0 0.0
    %112 = vmatprep.subr.mxu0 0.0
    %113 = vmatpush1.msra.mxu0 0.0
    %114 = vmatprep.subr.mxu0 0.0
    %115 = vmatpush1.msra.mxu0 0.0
    %116 = vmatprep.subr.mxu0 0.0
    %117 = vmatpush1.msra.mxu0 0.0
    %118 = vmatprep.subr.mxu0 0.0
    %119 = vmatpush1.msra.mxu0 0.0
    %120 = vmatprep.subr.mxu0 0.0
    %121 = vmatpush1.msra.mxu0 0.0
    %122 = vmatprep.subr.mxu0 0.0
    %123 = vmatpush1.msra.mxu0 0.0
    %124 = vmatprep.subr.mxu0 0.0
    %125 = vmatpush1.msra.mxu0 0.0
    %126 = vmatprep.subr.mxu0 0.0
    %127 = vmatpush1.msra.mxu0 0.0
    %128 = vmatprep.subr.mxu0 0.0
    %129 = vmatpush1.msra.mxu0 0.0
    %130 = vmatprep.subr.mxu0 0.0
    %131 = vmatpush1.msra.mxu0 0.0
    %132 = vmatprep.subr.mxu0 0.0
    %133 = vmatpush1.msra.mxu0 0.0
    %134 = vmatprep.subr.mxu0 0.0
    %135 = vmatpush1.msra.mxu0 0.0
    %136 = vmatprep.subr.mxu0 0.0
    %137 = vmatpush1.msra.mxu0 0.0
    %138 = vmatprep.subr.mxu0 0.0
    %139 = vmatpush1.msra.mxu0 0.0
    %140 = vmatprep.mubr.f32.mxu0 0.0
    %141 = vmatmul.mubr.f32.gmra.mrb[0].mxu0 %v71
    %v142 = vpop.f32.mrb[0].mxu0
    %v143 = vadd.f32 %v67, %v142
    %v144 = vpop.f32.mrb[0].mxu0
    %145 = vmatprep.mubr.f32.mxu0 0.0
    %146 = vmatmul.mubr.f32.gmra.mrb[0].mxu0 %v74
    %v147 = vpop.f32.mrb[0].mxu0
    %v148 = vadd.f32 %v67, %v147
    %v149 = vpop.f32.mrb[0].mxu0
    %150 = vdwg.mxu0
    %151 = vst.msk [vmem:[#allocation8] sm:$0xff] %vm69, %v143
    %152 = vst.msk [vmem:[#allocation8 + $0x8] sm:$0xff] %vm69, %v148
    %155 = vrot.lane.b32.xlu0 %v143, 112
    %v156 = vpop.permute.xlu0 %155
    %157 = vrot.lane.b32.xlu0 %v148, 112
    %v158 = vpop.permute.xlu0 %157
    %161 = vst.msk [vmem:[#allocation9] sm:$0xff] %vm69, %v156
    %162 = vst.msk [vmem:[#allocation9 + $0x8] sm:$0xff] %vm69, %v158
    %163 = vrot.lane.b32.xlu0 %v143, 96
    %v164 = vpop.permute.xlu0 %163
    %165 = vrot.lane.b32.xlu0 %v148, 96
    %v166 = vpop.permute.xlu0 %165
    %169 = vst.msk [vmem:[#allocation11] sm:$0xff] %vm69, %v164
    %170 = vst.msk [vmem:[#allocation11 + $0x8] sm:$0xff] %vm69, %v166
    // Predicated region
    $region26: #{lilt_self_attention_forward.4} parent=1 // pred_check
      _
    $region27: #{lilt_self_attention_forward.4} parent=1 // pred_check_branch
      %172 = sbr.rel (0) target = $region29
    $region28: #{lilt_self_attention_forward.4} parent=1 // pred_region
      %s174 = ssub.s32 256, 256
      %175 = vsyncadd [#allocation4], %s174
      %s176 = sshll.u32 [#allocation8], 4
      %s177 = int_to_ptr.vmem [resolvable:$true] %s176
      %182 = dma.vmem_to_hbm [thread:$0]  %s177, 256, %s3, [#allocation4], 128, 128, 8
    $region29: #{lilt_self_attention_forward.4} parent=1 // pred_fallthru
      _
    // Predicated region
    $region30: #{lilt_self_attention_forward.4} parent=1 // pred_check
      _
    $region31: #{lilt_self_attention_forward.4} parent=1 // pred_check_branch
      %184 = sbr.rel (0) target = $region33
    $region32: #{lilt_self_attention_forward.4} parent=1 // pred_region
      %s186 = ssub.s32 256, 256
      %187 = vsyncadd [#allocation10], %s186
      %s188 = sshll.u32 [#allocation9], 4
      %s189 = int_to_ptr.vmem [resolvable:$true] %s188
      %194 = dma.vmem_to_hbm [thread:$0]  %s189, 256, %s4, [#allocation10], 128, 128, 8
    $region33: #{lilt_self_attention_forward.4} parent=1 // pred_fallthru
      _
    // Predicated region
    $region34: #{lilt_self_attention_forward.4} parent=1 // pred_check
      _
    $region35: #{lilt_self_attention_forward.4} parent=1 // pred_check_branch
      %196 = sbr.rel (0) target = $region37
    $region36: #{lilt_self_attention_forward.4} parent=1 // pred_region
      %s198 = ssub.s32 256, 256
      %199 = vsyncadd [#allocation10], %s198
      %s200 = sshll.u32 [#allocation11], 4
      %s201 = int_to_ptr.vmem [resolvable:$true] %s200
      %206 = dma.vmem_to_hbm [thread:$0]  %s201, 256, %s5, [#allocation10], 128, 128, 8
    $region37: #{lilt_self_attention_forward.4} parent=1 // pred_fallthru
      _
    // Predicated region
    $region38: #{lilt_self_attention_forward.4} parent=1 // pred_check
      _
    $region39: #{lilt_self_attention_forward.4} parent=1 // pred_check_branch
      %208 = sbr.rel (0) target = $region41
    $region40: #{lilt_self_attention_forward.4} parent=1 // pred_region
      %209 = dma.done [#allocation4], 256
    $region41: #{lilt_self_attention_forward.4} parent=1 // pred_fallthru
      _
    // Predicated region
    $region42: #{lilt_self_attention_forward.4} parent=1 // pred_check
      _
    $region43: #{lilt_self_attention_forward.4} parent=1 // pred_check_branch
      %211 = sbr.rel (0) target = $region45
    $region44: #{lilt_self_attention_forward.4} parent=1 // pred_region
      %212 = dma.done [#allocation10], 256
    $region45: #{lilt_self_attention_forward.4} parent=1 // pred_fallthru
      _
    // Predicated region
    $region46: #{lilt_self_attention_forward.4} parent=1 // pred_check
      _
    $region47: #{lilt_self_attention_forward.4} parent=1 // pred_check_branch
      %214 = sbr.rel (0) target = $region49
    $region48: #{lilt_self_attention_forward.4} parent=1 // pred_region
      %215 = dma.done [#allocation10], 256
    $region49: #{lilt_self_attention_forward.4} parent=1 // pred_fallthru
      _
    %216 = vsyncpa [#allocation3], 1
    %217 = vsyncpa [#allocation6], 1
    %218 = vsyncpa [#allocation4], 1
    %219 = vsyncpa [#allocation10], 1

// kernel: lilt_self_attention_forward.5
$region0: #{lilt_self_attention_forward.5}
  #allocation0 [shape = 'u32[]', space=smem, size = 0x4, offset = 0x4, fixed_abs, tag = 'smem constant byte address 0x4 - core index']
  #allocation1 [shape = 'u32[144,128]{1,0:T(1,128)}', space=vmem, size = 0x12000, scoped, tag = 'internal scratch']
  %s0 = inlined_call_operand.vmem [shape: f32[2,8,32], index: 0, kind: input, shape index: {}]
  %s1 = inlined_call_operand.hbm [shape: f32[2,8,32], index: 1, kind: input, shape index: {}]
  %s2 = inlined_call_operand.hbm [shape: f32[2,8,32], index: 2, kind: input, shape index: {}]
  %s3 = inlined_call_operand.hbm [shape: f32[2,8,16], index: 3, kind: input, shape index: {}]
  %s4 = inlined_call_operand.hbm [shape: f32[2,8,16], index: 4, kind: input, shape index: {}]
  %s5 = inlined_call_operand.hbm [shape: f32[2,8,16], index: 5, kind: input, shape index: {}]
  %s6 = inlined_call_operand.vmem [shape: f32[2,1,8], index: 6, kind: input, shape index: {}]
  %s7 = inlined_call_operand.hbm [shape: f32[2,8,32], index: 7, kind: output, shape index: {0}]
  %s8 = inlined_call_operand.hbm [shape: f32[2,8,16], index: 8, kind: output, shape index: {1}]
  %9 = xla_tuple %s7, %s8
  %s10 = sld [smem:[#allocation0]]
  $region89: #{lilt_self_attention_forward.5} parent=0
    _
  %s12 = ssub.s32 1, %s10
  %s13 = scalar_select 0, %s12, %s10
  $region1: #{lilt_self_attention_forward.5} parent=0
    #allocation2 [shape = 'u8[8192]{0}', space=vmem, size = 0x2000, scoped, tag = 'input window, operand 1']
    #allocation3 [shape = 's32[2]{0}', space=sflag, size = 0x8, scoped, tag = 'scoped memory for lilt_self_attention_forward.5']
    #allocation4 [shape = 's32[2]{0}', space=sflag, size = 0x8, scoped, tag = 'scoped memory for lilt_self_attention_forward.5']
    #allocation5 [shape = 'u8[8192]{0}', space=vmem, size = 0x2000, scoped, tag = 'input window, operand 2']
    #allocation6 [shape = 's32[2]{0}', space=sflag, size = 0x8, scoped, tag = 'scoped memory for lilt_self_attention_forward.5']
    #allocation7 [shape = 'u8[8192]{0}', space=vmem, size = 0x2000, scoped, tag = 'input window, operand 3']
    #allocation8 [shape = 'u8[8192]{0}', space=vmem, size = 0x2000, scoped, tag = 'input window, operand 4']
    #allocation9 [shape = 's32[2]{0}', space=sflag, size = 0x8, scoped, tag = 'scoped memory for lilt_self_attention_forward.5']
    #allocation10 [shape = 'u8[8192]{0}', space=vmem, size = 0x2000, scoped, tag = 'input window, operand 5']
    #allocation11 [shape = 'u8[8192]{0}', space=vmem, size = 0x2000, scoped, tag = 'output window, operand 0']
    #allocation12 [shape = 'u8[8192]{0}', space=vmem, size = 0x2000, scoped, tag = 'output window, operand 1']
    #allocation13 [shape = 's32[2]{0}', space=sflag, size = 0x8, scoped, tag = 'scoped memory for lilt_self_attention_forward.5']
    %14 = vsyncpa [#allocation3], 0
    %s15 = scalar_lea.sflag [#allocation3], 1
    %16 = vsyncpa %s15, 0
    %17 = vsyncpa [#allocation6], 0
    %s18 = scalar_lea.sflag [#allocation6], 1
    %19 = vsyncpa %s18, 0
    %20 = vsyncpa [#allocation9], 0
    %s21 = scalar_lea.sflag [#allocation9], 1
    %22 = vsyncpa %s21, 0
    %23 = vsyncpa [#allocation4], 0
    %s24 = scalar_lea.sflag [#allocation4], 1
    %25 = vsyncpa %s24, 0
    %26 = vsyncpa [#allocation13], 0
    %s27 = scalar_lea.sflag [#allocation13], 1
    %28 = vsyncpa %s27, 0
    loop: start=0, step=1, limit=4
    $region2: #{lilt_self_attention_forward.5} parent=1 // loop_pre_header
      _
    $region3: #{lilt_self_attention_forward.5} parent=1 // loop_header
      %s30 = sphi 0, %s34
      %p31 = scmp.ge.s32.totalorder %s30, 4
      %s37 = sphi 0, %s49
      %s38 = sphi 0, %s45
      %s39 = sphi 0, %s37
      %s40 = sphi 0, %s38
      %s41 = sphi 0, %s39
      %s42 = sphi 0, %s40
      %s54 = sphi 0, %s56
      %s57 = sphi 0, %s54
      %s58 = sphi 0, %s57
      %s74 = sphi 0, %s58
      %s80 = sphi 0, %s82
      %s83 = sphi 0, %s80
      %s84 = sphi 0, %s83
      %s100 = sphi 0, %s84
      %s106 = sphi 0, %s108
      %s109 = sphi 0, %s106
      %s110 = sphi 0, %s109
      %s126 = sphi 0, %s110
      %s134 = sphi 0, %s136
      %s137 = sphi 0, %s134
      %s138 = sphi 0, %s137
      %s154 = sphi 0, %s138
      %s160 = sphi 0, %s162
      %s163 = sphi 0, %s160
      %s164 = sphi 0, %s163
      %s180 = sphi 0, %s164
      %s186 = sphi 0, %s188
      %s189 = sphi 0, %s186
      %s190 = sphi 0, %s189
      %s206 = sphi 0, %s190
      %s212 = sphi 0, %s214
      %s215 = sphi 0, %s212
      %s216 = sphi 0, %s215
      %s232 = sphi 0, %s216
      %s240 = sphi 0, %s242
      %s243 = sphi 0, %s240
      %s244 = sphi 0, %s243
      %s260 = sphi 0, %s244
      %s268 = sphi 0, %s270
      %s271 = sphi 0, %s268
      %s272 = sphi 0, %s271
      %s288 = sphi 0, %s272
    $region4: #{lilt_self_attention_forward.5} parent=1 // loop_header_branch
      %33 = sbr.rel (%p31) target = $region8
    $region5: #{lilt_self_attention_forward.5} parent=1 // loop_body
      %s35 = ssub.s32 %s30, 1
      %s36 = ssub.s32 %s30, 2
      %s43 = sadd.s32 1, %s38
      %p44 = scmp.ge.s32.totalorder %s43, 1
      %s45 = scalar_select %p44, 0, %s43
      %s46 = sadd.s32 1, %s37
      %s47 = scalar_select %p44, %s46, %s37
      %p48 = scmp.ge.s32.totalorder %s47, 2
      %s49 = scalar_select %p48, 0, %s47
      %s50 = ssub.s32 %s37, %s49
      %s51 = ssub.s32 %s38, %s45
      %s52 = sor.u32 %s50, %s51
      %p53 = scmp.eq.s32.totalorder %s52, 0
      %s55 = sadd.s32 %s54, 1
      %s56 = scalar_select %p53, %s54, %s55
      %p59 = pneg %p53
      %p60 = scmp.eq.s32.totalorder %s30, 1
      %p61 = por %p59, %p60
      %p62 = scmp.ne.s32.totalorder %s54, %s57
      %p63 = scmp.eq.s32.totalorder %s30, 0
      %p64 = por %p62, %p63
      %p65 = scmp.ne.s32.totalorder %s54, %s57
      %p66 = scmp.eq.s32.totalorder %s35, 1
      %p67 = por %p65, %p66
      %p68 = scmp.ne.s32.totalorder %s57, %s58
      %p69 = scmp.eq.s32.totalorder %s35, 0
      %p70 = por %p68, %p69
      %p71 = scmp.ne.s32.totalorder %s57, %s58
      %p72 = scmp.eq.s32.totalorder %s36, 1
      %p73 = por %p71, %p72
      %p75 = scmp.ne.s32.totalorder %s58, %s74
      %p76 = scmp.eq.s32.totalorder %s36, 0
      %p77 = por %p75, %p76
      %s78 = ssub.s32 %s37, %s49
      %p79 = scmp.eq.s32.totalorder %s78, 0
      %s81 = sadd.s32 %s80, 1
      %s82 = scalar_select %p79, %s80, %s81
      %p85 = pneg %p79
      %p86 = scmp.eq.s32.totalorder %s30, 1
      %p87 = por %p85, %p86
      %p88 = scmp.ne.s32.totalorder %s80, %s83
      %p89 = scmp.eq.s32.totalorder %s30, 0
      %p90 = por %p88, %p89
      %p91 = scmp.ne.s32.totalorder %s80, %s83
      %p92 = scmp.eq.s32.totalorder %s35, 1
      %p93 = por %p91, %p92
      %p94 = scmp.ne.s32.totalorder %s83, %s84
      %p95 = scmp.eq.s32.totalorder %s35, 0
      %p96 = por %p94, %p95
      %p97 = scmp.ne.s32.totalorder %s83, %s84
      %p98 = scmp.eq.s32.totalorder %s36, 1
      %p99 = por %p97, %p98
      %p101 = scmp.ne.s32.totalorder %s84, %s100
      %p102 = scmp.eq.s32.totalorder %s36, 0
      %p103 = por %p101, %p102
      %s104 = ssub.s32 %s37, %s49
      %p105 = scmp.eq.s32.totalorder %s104, 0
      %s107 = sadd.s32 %s106, 1
      %s108 = scalar_select %p105, %s106, %s107
      %p111 = pneg %p105
      %p112 = scmp.eq.s32.totalorder %s30, 1
      %p113 = por %p111, %p112
      %p114 = scmp.ne.s32.totalorder %s106, %s109
      %p115 = scmp.eq.s32.totalorder %s30, 0
      %p116 = por %p114, %p115
      %p117 = scmp.ne.s32.totalorder %s106, %s109
      %p118 = scmp.eq.s32.totalorder %s35, 1
      %p119 = por %p117, %p118
      %p120 = scmp.ne.s32.totalorder %s109, %s110
      %p121 = scmp.eq.s32.totalorder %s35, 0
      %p122 = por %p120, %p121
      %p123 = scmp.ne.s32.totalorder %s109, %s110
      %p124 = scmp.eq.s32.totalorder %s36, 1
      %p125 = por %p123, %p124
      %p127 = scmp.ne.s32.totalorder %s110, %s126
      %p128 = scmp.eq.s32.totalorder %s36, 0
      %p129 = por %p127, %p128
      %s130 = ssub.s32 %s37, %s49
      %s131 = ssub.s32 %s38, %s45
      %s132 = sor.u32 %s130, %s131
      %p133 = scmp.eq.s32.totalorder %s132, 0
      %s135 = sadd.s32 %s134, 1
      %s136 = scalar_select %p133, %s134, %s135
      %p139 = pneg %p133
      %p140 = scmp.eq.s32.totalorder %s30, 1
      %p141 = por %p139, %p140
      %p142 = scmp.ne.s32.totalorder %s134, %s137
      %p143 = scmp.eq.s32.totalorder %s30, 0
      %p144 = por %p142, %p143
      %p145 = scmp.ne.s32.totalorder %s134, %s137
      %p146 = scmp.eq.s32.totalorder %s35, 1
      %p147 = por %p145, %p146
      %p148 = scmp.ne.s32.totalorder %s137, %s138
      %p149 = scmp.eq.s32.totalorder %s35, 0
      %p150 = por %p148, %p149
      %p151 = scmp.ne.s32.totalorder %s137, %s138
      %p152 = scmp.eq.s32.totalorder %s36, 1
      %p153 = por %p151, %p152
      %p155 = scmp.ne.s32.totalorder %s138, %s154
      %p156 = scmp.eq.s32.totalorder %s36, 0
      %p157 = por %p155, %p156
      %s158 = ssub.s32 %s37, %s49
      %p159 = scmp.eq.s32.totalorder %s158, 0
      %s161 = sadd.s32 %s160, 1
      %s162 = scalar_select %p159, %s160, %s161
      %p165 = pneg %p159
      %p166 = scmp.eq.s32.totalorder %s30, 1
      %p167 = por %p165, %p166
      %p168 = scmp.ne.s32.totalorder %s160, %s163
      %p169 = scmp.eq.s32.totalorder %s30, 0
      %p170 = por %p168, %p169
      %p171 = scmp.ne.s32.totalorder %s160, %s163
      %p172 = scmp.eq.s32.totalorder %s35, 1
      %p173 = por %p171, %p172
      %p174 = scmp.ne.s32.totalorder %s163, %s164
      %p175 = scmp.eq.s32.totalorder %s35, 0
      %p176 = por %p174, %p175
      %p177 = scmp.ne.s32.totalorder %s163, %s164
      %p178 = scmp.eq.s32.totalorder %s36, 1
      %p179 = por %p177, %p178
      %p181 = scmp.ne.s32.totalorder %s164, %s180
      %p182 = scmp.eq.s32.totalorder %s36, 0
      %p183 = por %p181, %p182
      %s184 = ssub.s32 %s37, %s49
      %p185 = scmp.eq.s32.totalorder %s184, 0
      %s187 = sadd.s32 %s186, 1
      %s188 = scalar_select %p185, %s186, %s187
      %p191 = pneg %p185
      %p192 = scmp.eq.s32.totalorder %s30, 1
      %p193 = por %p191, %p192
      %p194 = scmp.ne.s32.totalorder %s186, %s189
      %p195 = scmp.eq.s32.totalorder %s30, 0
      %p196 = por %p194, %p195
      %p197 = scmp.ne.s32.totalorder %s186, %s189
      %p198 = scmp.eq.s32.totalorder %s35, 1
      %p199 = por %p197, %p198
      %p200 = scmp.ne.s32.totalorder %s189, %s190
      %p201 = scmp.eq.s32.totalorder %s35, 0
      %p202 = por %p200, %p201
      %p203 = scmp.ne.s32.totalorder %s189, %s190
      %p204 = scmp.eq.s32.totalorder %s36, 1
      %p205 = por %p203, %p204
      %p207 = scmp.ne.s32.totalorder %s190, %s206
      %p208 = scmp.eq.s32.totalorder %s36, 0
      %p209 = por %p207, %p208
      %s210 = ssub.s32 %s37, %s49
      %p211 = scmp.eq.s32.totalorder %s210, 0
      %s213 = sadd.s32 %s212, 1
      %s214 = scalar_select %p211, %s212, %s213
      %p217 = pneg %p211
      %p218 = scmp.eq.s32.totalorder %s30, 1
      %p219 = por %p217, %p218
      %p220 = scmp.ne.s32.totalorder %s212, %s215
      %p221 = scmp.eq.s32.totalorder %s30, 0
      %p222 = por %p220, %p221
      %p223 = scmp.ne.s32.totalorder %s212, %s215
      %p224 = scmp.eq.s32.totalorder %s35, 1
      %p225 = por %p223, %p224
      %p226 = scmp.ne.s32.totalorder %s215, %s216
      %p227 = scmp.eq.s32.totalorder %s35, 0
      %p228 = por %p226, %p227
      %p229 = scmp.ne.s32.totalorder %s215, %s216
      %p230 = scmp.eq.s32.totalorder %s36, 1
      %p231 = por %p229, %p230
      %p233 = scmp.ne.s32.totalorder %s216, %s232
      %p234 = scmp.eq.s32.totalorder %s36, 0
      %p235 = por %p233, %p234
      %s236 = ssub.s32 %s37, %s49
      %s237 = ssub.s32 %s38, %s45
      %s238 = sor.u32 %s236, %s237
      %p239 = scmp.eq.s32.totalorder %s238, 0
      %s241 = sadd.s32 %s240, 1
      %s242 = scalar_select %p239, %s240, %s241
      %p245 = pneg %p239
      %p246 = scmp.eq.s32.totalorder %s30, 1
      %p247 = por %p245, %p246
      %p248 = scmp.ne.s32.totalorder %s240, %s243
      %p249 = scmp.eq.s32.totalorder %s30, 0
      %p250 = por %p248, %p249
      %p251 = scmp.ne.s32.totalorder %s240, %s243
      %p252 = scmp.eq.s32.totalorder %s35, 1
      %p253 = por %p251, %p252
      %p254 = scmp.ne.s32.totalorder %s243, %s244
      %p255 = scmp.eq.s32.totalorder %s35, 0
      %p256 = por %p254, %p255
      %p257 = scmp.ne.s32.totalorder %s243, %s244
      %p258 = scmp.eq.s32.totalorder %s36, 1
      %p259 = por %p257, %p258
      %p261 = scmp.ne.s32.totalorder %s244, %s260
      %p262 = scmp.eq.s32.totalorder %s36, 0
      %p263 = por %p261, %p262
      %s264 = ssub.s32 %s37, %s49
      %s265 = ssub.s32 %s38, %s45
      %s266 = sor.u32 %s264, %s265
      %p267 = scmp.eq.s32.totalorder %s266, 0
      %s269 = sadd.s32 %s268, 1
      %s270 = scalar_select %p267, %s268, %s269
      %p273 = pneg %p267
      %p274 = scmp.eq.s32.totalorder %s30, 1
      %p275 = por %p273, %p274
      %p276 = scmp.ne.s32.totalorder %s268, %s271
      %p277 = scmp.eq.s32.totalorder %s30, 0
      %p278 = por %p276, %p277
      %p279 = scmp.ne.s32.totalorder %s268, %s271
      %p280 = scmp.eq.s32.totalorder %s35, 1
      %p281 = por %p279, %p280
      %p282 = scmp.ne.s32.totalorder %s271, %s272
      %p283 = scmp.eq.s32.totalorder %s35, 0
      %p284 = por %p282, %p283
      %p285 = scmp.ne.s32.totalorder %s271, %s272
      %p286 = scmp.eq.s32.totalorder %s36, 1
      %p287 = por %p285, %p286
      %p289 = scmp.ne.s32.totalorder %s272, %s288
      %p290 = scmp.eq.s32.totalorder %s36, 0
      %p291 = por %p289, %p290
      %p292 = scmp.le.s32.totalorder 1, %s30
      %p293 = scmp.lt.s32.totalorder %s30, 3
      %p294 = pnand %p292, %p293
      %p295 = pneg %p294
      // Predicated region
      $region9: #{lilt_self_attention_forward.5} parent=5 // pred_check
        _
      $region10: #{lilt_self_attention_forward.5} parent=5 // pred_check_branch
        %297 = sbr.rel (%p294) target = $region12
      $region11: #{lilt_self_attention_forward.5} parent=5 // pred_region
        %s298 = ssub.s32 %s30, 1
      $region12: #{lilt_self_attention_forward.5} parent=5 // pred_fallthru
        _
      %p299 = scmp.lt.s32.totalorder %s30, 2
      // Predicated region
      $region13: #{lilt_self_attention_forward.5} parent=5 // pred_check
        %p300 = pneg %p299
      $region14: #{lilt_self_attention_forward.5} parent=5 // pred_check_branch
        %302 = sbr.rel (%p300) target = $region16
      $region15: #{lilt_self_attention_forward.5} parent=5 // pred_region
        // Predicated region
        $region17: #{lilt_self_attention_forward.5} parent=15 // pred_check
          %p303 = pneg %p64
        $region18: #{lilt_self_attention_forward.5} parent=15 // pred_check_branch
          %305 = sbr.rel (%p303) target = $region20
        $region19: #{lilt_self_attention_forward.5} parent=15 // pred_region
          %p306 = scmp.lt.s32.totalorder %s37, 1
          %s307 = scalar_select %p306, %s37, 1
          %p308 = scmp.lt.s32.totalorder %s38, 0
          %s309 = scalar_select %p308, %s38, 0
          %s310 = sadd.s32 %s309, %s307
          %s311 = smul.addr %s310, 8
          %s312 = scalar_lea.vmem %s0, %s311
        $region20: #{lilt_self_attention_forward.5} parent=15 // pred_fallthru
          _
        // Predicated region
        $region21: #{lilt_self_attention_forward.5} parent=15 // pred_check
          %p313 = pneg %p90
        $region22: #{lilt_self_attention_forward.5} parent=15 // pred_check_branch
          %315 = sbr.rel (%p313) target = $region24
        $region23: #{lilt_self_attention_forward.5} parent=15 // pred_region
          %s316 = sand.u32 %s80, 1
          %s317 = scalar_lea.sflag [#allocation3], %s316
          %s318 = sand.u32 %s80, 1
          %s319 = smul.addr %s318, 8
          %s320 = scalar_lea.vmem [#allocation2], %s319
          %s322 = ssub.s32 128, 128
          %323 = vsyncadd %s317, %s322
          %s324 = smul.addr %s37, 128
          %s325 = scalar_lea.hbm %s1, %s324
          %s327 = sshll.u32 %s320, 4
          %s328 = int_to_ptr.vmem [resolvable:$true] %s327
          %330 = dma.hbm_to_vmem [thread:$0]  %s325, 128, %s328, %s317
        $region24: #{lilt_self_attention_forward.5} parent=15 // pred_fallthru
          _
        // Predicated region
        $region25: #{lilt_self_attention_forward.5} parent=15 // pred_check
          %p331 = pneg %p116
        $region26: #{lilt_self_attention_forward.5} parent=15 // pred_check_branch
          %333 = sbr.rel (%p331) target = $region28
        $region27: #{lilt_self_attention_forward.5} parent=15 // pred_region
          %s334 = sand.u32 %s30, 1
          %s335 = scalar_lea.sflag [#allocation6], %s334
          %s336 = sand.u32 %s106, 1
          %s337 = smul.addr %s336, 8
          %s338 = scalar_lea.vmem [#allocation5], %s337
          %s340 = ssub.s32 128, 128
          %341 = vsyncadd %s335, %s340
          %s342 = smul.addr %s37, 128
          %s343 = scalar_lea.hbm %s2, %s342
          %s345 = sshll.u32 %s338, 4
          %s346 = int_to_ptr.vmem [resolvable:$true] %s345
          %348 = dma.hbm_to_vmem [thread:$0]  %s343, 128, %s346, %s335
        $region28: #{lilt_self_attention_forward.5} parent=15 // pred_fallthru
          _
        // Predicated region
        $region29: #{lilt_self_attention_forward.5} parent=15 // pred_check
          %p349 = pneg %p144
        $region30: #{lilt_self_attention_forward.5} parent=15 // pred_check_branch
          %351 = sbr.rel (%p349) target = $region32
        $region31: #{lilt_self_attention_forward.5} parent=15 // pred_region
          %s352 = sand.u32 %s30, 1
          %s353 = scalar_lea.sflag [#allocation6], %s352
          %s354 = sand.u32 %s134, 1
          %s355 = smul.addr %s354, 8
          %s356 = scalar_lea.vmem [#allocation7], %s355
          %s358 = ssub.s32 128, 128
          %359 = vsyncadd %s353, %s358
          %s360 = sadd.s32 %s38, %s37
          %s361 = smul.addr %s360, 128
          %s362 = scalar_lea.hbm %s3, %s361
          %s364 = sshll.u32 %s356, 4
          %s365 = int_to_ptr.vmem [resolvable:$true] %s364
          %367 = dma.hbm_to_vmem [thread:$0]  %s362, 128, %s365, %s353
        $region32: #{lilt_self_attention_forward.5} parent=15 // pred_fallthru
          _
        // Predicated region
        $region33: #{lilt_self_attention_forward.5} parent=15 // pred_check
          %p368 = pneg %p170
        $region34: #{lilt_self_attention_forward.5} parent=15 // pred_check_branch
          %370 = sbr.rel (%p368) target = $region36
        $region35: #{lilt_self_attention_forward.5} parent=15 // pred_region
          %s371 = sand.u32 %s30, 1
          %s372 = scalar_lea.sflag [#allocation9], %s371
          %s373 = sand.u32 %s160, 1
          %s374 = smul.addr %s373, 8
          %s375 = scalar_lea.vmem [#allocation8], %s374
          %s377 = ssub.s32 128, 128
          %378 = vsyncadd %s372, %s377
          %s379 = smul.addr %s37, 128
          %s380 = scalar_lea.hbm %s4, %s379
          %s382 = sshll.u32 %s375, 4
          %s383 = int_to_ptr.vmem [resolvable:$true] %s382
          %385 = dma.hbm_to_vmem [thread:$0]  %s380, 128, %s383, %s372
        $region36: #{lilt_self_attention_forward.5} parent=15 // pred_fallthru
          _
        // Predicated region
        $region37: #{lilt_self_attention_forward.5} parent=15 // pred_check
          %p386 = pneg %p196
        $region38: #{lilt_self_attention_forward.5} parent=15 // pred_check_branch
          %388 = sbr.rel (%p386) target = $region40
        $region39: #{lilt_self_attention_forward.5} parent=15 // pred_region
          %s389 = sand.u32 %s30, 1
          %s390 = scalar_lea.sflag [#allocation9], %s389
          %s391 = sand.u32 %s186, 1
          %s392 = smul.addr %s391, 8
          %s393 = scalar_lea.vmem [#allocation10], %s392
          %s395 = ssub.s32 128, 128
          %396 = vsyncadd %s390, %s395
          %s397 = smul.addr %s37, 128
          %s398 = scalar_lea.hbm %s5, %s397
          %s400 = sshll.u32 %s393, 4
          %s401 = int_to_ptr.vmem [resolvable:$true] %s400
          %403 = dma.hbm_to_vmem [thread:$0]  %s398, 128, %s401, %s390
        $region40: #{lilt_self_attention_forward.5} parent=15 // pred_fallthru
          _
        // Predicated region
        $region41: #{lilt_self_attention_forward.5} parent=15 // pred_check
          %p404 = pneg %p222
        $region42: #{lilt_self_attention_forward.5} parent=15 // pred_check_branch
          %406 = sbr.rel (%p404) target = $region44
        $region43: #{lilt_self_attention_forward.5} parent=15 // pred_region
          %p407 = scmp.lt.s32.totalorder %s37, 1
          %s408 = scalar_select %p407, %s37, 1
          %s409 = scalar_lea.vmem %s6, %s408
        $region44: #{lilt_self_attention_forward.5} parent=15 // pred_fallthru
          _
      $region16: #{lilt_self_attention_forward.5} parent=5 // pred_fallthru
        _
      %p410 = scmp.le.s32.totalorder 1, %s30
      %p411 = scmp.lt.s32.totalorder %s30, 3
      %p412 = pnand %p410, %p411
      %p413 = pneg %p412
      // Predicated region
      $region45: #{lilt_self_attention_forward.5} parent=5 // pred_check
        _
      $region46: #{lilt_self_attention_forward.5} parent=5 // pred_check_branch
        %415 = sbr.rel (%p412) target = $region48
      $region47: #{lilt_self_attention_forward.5} parent=5 // pred_region
        %s416 = ssub.s32 %s30, 1
        %s417 = sand.u32 %s83, 1
        %s418 = scalar_lea.sflag [#allocation3], %s417
        %s419 = sand.u32 %s83, 1
        %s420 = smul.addr %s419, 8
        %s421 = scalar_lea.vmem [#allocation2], %s420
        // Predicated region
        $region49: #{lilt_self_attention_forward.5} parent=47 // pred_check
          %p422 = pneg %p96
        $region50: #{lilt_self_attention_forward.5} parent=47 // pred_check_branch
          %424 = sbr.rel (%p422) target = $region52
        $region51: #{lilt_self_attention_forward.5} parent=47 // pred_region
          %425 = dma.done %s418, 128
        $region52: #{lilt_self_attention_forward.5} parent=47 // pred_fallthru
          _
        %s426 = sand.u32 %s35, 1
        %s427 = scalar_lea.sflag [#allocation6], %s426
        %s428 = sand.u32 %s109, 1
        %s429 = smul.addr %s428, 8
        %s430 = scalar_lea.vmem [#allocation5], %s429
        // Predicated region
        $region53: #{lilt_self_attention_forward.5} parent=47 // pred_check
          %p431 = pneg %p122
        $region54: #{lilt_self_attention_forward.5} parent=47 // pred_check_branch
          %433 = sbr.rel (%p431) target = $region56
        $region55: #{lilt_self_attention_forward.5} parent=47 // pred_region
          %434 = dma.done %s427, 128
        $region56: #{lilt_self_attention_forward.5} parent=47 // pred_fallthru
          _
        %s435 = sand.u32 %s35, 1
        %s436 = scalar_lea.sflag [#allocation6], %s435
        %s437 = sand.u32 %s137, 1
        %s438 = smul.addr %s437, 8
        %s439 = scalar_lea.vmem [#allocation7], %s438
        // Predicated region
        $region57: #{lilt_self_attention_forward.5} parent=47 // pred_check
          %p440 = pneg %p150
        $region58: #{lilt_self_attention_forward.5} parent=47 // pred_check_branch
          %442 = sbr.rel (%p440) target = $region60
        $region59: #{lilt_self_attention_forward.5} parent=47 // pred_region
          %443 = dma.done %s436, 128
        $region60: #{lilt_self_attention_forward.5} parent=47 // pred_fallthru
          _
        %s444 = sand.u32 %s35, 1
        %s445 = scalar_lea.sflag [#allocation9], %s444
        %s446 = sand.u32 %s163, 1
        %s447 = smul.addr %s446, 8
        %s448 = scalar_lea.vmem [#allocation8], %s447
        // Predicated region
        $region61: #{lilt_self_attention_forward.5} parent=47 // pred_check
          %p449 = pneg %p176
        $region62: #{lilt_self_attention_forward.5} parent=47 // pred_check_branch
          %451 = sbr.rel (%p449) target = $region64
        $region63: #{lilt_self_attention_forward.5} parent=47 // pred_region
          %452 = dma.done %s445, 128
        $region64: #{lilt_self_attention_forward.5} parent=47 // pred_fallthru
          _
        %s453 = sand.u32 %s35, 1
        %s454 = scalar_lea.sflag [#allocation9], %s453
        %s455 = sand.u32 %s189, 1
        %s456 = smul.addr %s455, 8
        %s457 = scalar_lea.vmem [#allocation10], %s456
        // Predicated region
        $region65: #{lilt_self_attention_forward.5} parent=47 // pred_check
          %p458 = pneg %p202
        $region66: #{lilt_self_attention_forward.5} parent=47 // pred_check_branch
          %460 = sbr.rel (%p458) target = $region68
        $region67: #{lilt_self_attention_forward.5} parent=47 // pred_region
          %461 = dma.done %s454, 128
        $region68: #{lilt_self_attention_forward.5} parent=47 // pred_fallthru
          _
        %p462 = scmp.lt.s32.totalorder %s39, 1
        %s463 = scalar_select %p462, %s39, 1
        %p464 = scmp.lt.s32.totalorder %s40, 0
        %s465 = scalar_select %p464, %s40, 0
        %s466 = sadd.s32 %s465, %s463
        %s467 = smul.addr %s466, 8
        %s468 = scalar_lea.vmem %s0, %s467
        %p469 = pneg %p70
        %p470 = pneg %p67
        %s471 = sand.u32 %s83, 1
        %s472 = scalar_lea.sflag [#allocation3], %s471
        %s473 = sand.u32 %s83, 1
        %s474 = smul.addr %s473, 8
        %s475 = scalar_lea.vmem [#allocation2], %s474
        %p476 = pneg %p96
        %p477 = pneg %p93
        %s478 = sand.u32 %s35, 1
        %s479 = scalar_lea.sflag [#allocation6], %s478
        %s480 = sand.u32 %s109, 1
        %s481 = smul.addr %s480, 8
        %s482 = scalar_lea.vmem [#allocation5], %s481
        %p483 = pneg %p122
        %p484 = pneg %p119
        %s485 = sand.u32 %s35, 1
        %s486 = scalar_lea.sflag [#allocation6], %s485
        %s487 = sand.u32 %s137, 1
        %s488 = smul.addr %s487, 8
        %s489 = scalar_lea.vmem [#allocation7], %s488
        %p490 = pneg %p150
        %p491 = pneg %p147
        %s492 = sand.u32 %s35, 1
        %s493 = scalar_lea.sflag [#allocation9], %s492
        %s494 = sand.u32 %s163, 1
        %s495 = smul.addr %s494, 8
        %s496 = scalar_lea.vmem [#allocation8], %s495
        %p497 = pneg %p176
        %p498 = pneg %p173
        %s499 = sand.u32 %s35, 1
        %s500 = scalar_lea.sflag [#allocation9], %s499
        %s501 = sand.u32 %s189, 1
        %s502 = smul.addr %s501, 8
        %s503 = scalar_lea.vmem [#allocation10], %s502
        %p504 = pneg %p202
        %p505 = pneg %p199
        %p506 = scmp.lt.s32.totalorder %s39, 1
        %s507 = scalar_select %p506, %s39, 1
        %s508 = scalar_lea.vmem %s6, %s507
        %p509 = pneg %p228
        %p510 = pneg %p225
        %p511 = pneg %p256
        %p512 = pneg %p253
        %s513 = sand.u32 %s243, 1
        %s514 = scalar_lea.sflag [#allocation4], %s513
        %s515 = sand.u32 %s243, 1
        %s516 = smul.addr %s515, 8
        %s517 = scalar_lea.vmem [#allocation11], %s516
        %p518 = pneg %p284
        %p519 = pneg %p281
        %s520 = sand.u32 %s271, 1
        %s521 = scalar_lea.sflag [#allocation13], %s520
        %s522 = sand.u32 %s271, 1
        %s523 = smul.addr %s522, 8
        %s524 = scalar_lea.vmem [#allocation12], %s523
        %p525 = scmp.lt.s32.totalorder %s39, 1
        %s526 = scalar_select %p525, %s39, 1
        %p527 = scmp.lt.s32.totalorder %s40, 0
        %s528 = scalar_select %p527, %s40, 0
        %s529 = sadd.s32 %s528, %s526
        %s530 = smul.addr %s529, 8
        %s531 = scalar_lea.vmem %s0, %s530
        %p532 = scmp.lt.s32.totalorder %s39, 1
        %s533 = scalar_select %p532, %s39, 1
        %s534 = scalar_lea.vmem %s6, %s533
        %v535 = vld [vmem:[%s531] sm:$0xff]
        %v536 = vld [vmem:[%s421] sm:$0xff]
        %v537 = vld [vmem:[%s430] sm:$0xff]
        %v538 = vld [vmem:[%s439] sm:$0xff]
        %v539 = vld [vmem:[%s448] sm:$0xff]
        %v540 = vld [vmem:[%s457] sm:$0xff]
        %v541 = vld [vmem:[%s534] sm:$0x1]
        %vm542 = vcmask 31744
        %v544 = vsel %vm542, %v538, 0
        %v547 = vsel %vm542, %v539, 0
        %549 = vmatprep.subr.mxu0 0.0
        %550 = vmatpush1.xpose.msra.mxu0 %v547
        %551 = vmatprep.subr.mxu0 0.0
        %552 = vmatpush1.xpose.msra.mxu0 0.0
        %553 = vmatprep.subr.mxu0 0.0
        %554 = vmatpush1.xpose.msra.mxu0 0.0
        %555 = vmatprep.subr.mxu0 0.0
        %556 = vmatpush1.xpose.msra.mxu0 0.0
        %557 = vmatprep.subr.mxu0 0.0
        %558 = vmatpush1.xpose.msra.mxu0 0.0
        %559 = vmatprep.subr.mxu0 0.0
        %560 = vmatpush1.xpose.msra.mxu0 0.0
        %561 = vmatprep.subr.mxu0 0.0
        %562 = vmatpush1.xpose.msra.mxu0 0.0
        %563 = vmatprep.subr.mxu0 0.0
        %564 = vmatpush1.xpose.msra.mxu0 0.0
        %565 = vmatprep.subr.mxu0 0.0
        %566 = vmatpush1.xpose.msra.mxu0 0.0
        %567 = vmatprep.subr.mxu0 0.0
        %568 = vmatpush1.xpose.msra.mxu0 0.0
        %569 = vmatprep.subr.mxu0 0.0
        %570 = vmatpush1.xpose.msra.mxu0 0.0
        %571 = vmatprep.subr.mxu0 0.0
        %572 = vmatpush1.xpose.msra.mxu0 0.0
        %573 = vmatprep.subr.mxu0 0.0
        %574 = vmatpush1.xpose.msra.mxu0 0.0
        %575 = vmatprep.subr.mxu0 0.0
        %576 = vmatpush1.xpose.msra.mxu0 0.0
        %577 = vmatprep.subr.mxu0 0.0
        %578 = vmatpush1.xpose.msra.mxu0 0.0
        %579 = vmatprep.subr.mxu0 0.0
        %580 = vmatpush1.xpose.msra.mxu0 0.0
        %581 = vmatprep.subr.mxu0 0.0
        %582 = vmatpush1.xpose.msra.mxu0 0.0
        %583 = vmatprep.subr.mxu0 0.0
        %584 = vmatpush1.xpose.msra.mxu0 0.0
        %585 = vmatprep.subr.mxu0 0.0
        %586 = vmatpush1.xpose.msra.mxu0 0.0
        %587 = vmatprep.subr.mxu0 0.0
        %588 = vmatpush1.xpose.msra.mxu0 0.0
        %589 = vmatprep.subr.mxu0 0.0
        %590 = vmatpush1.xpose.msra.mxu0 0.0
        %591 = vmatprep.subr.mxu0 0.0
        %592 = vmatpush1.xpose.msra.mxu0 0.0
        %593 = vmatprep.subr.mxu0 0.0
        %594 = vmatpush1.xpose.msra.mxu0 0.0
        %595 = vmatprep.subr.mxu0 0.0
        %596 = vmatpush1.xpose.msra.mxu0 0.0
        %597 = vmatprep.subr.mxu0 0.0
        %598 = vmatpush1.xpose.msra.mxu0 0.0
        %599 = vmatprep.subr.mxu0 0.0
        %600 = vmatpush1.xpose.msra.mxu0 0.0
        %601 = vmatprep.subr.mxu0 0.0
        %602 = vmatpush1.xpose.msra.mxu0 0.0
        %603 = vmatprep.subr.mxu0 0.0
        %604 = vmatpush1.xpose.msra.mxu0 0.0
        %605 = vmatprep.subr.mxu0 0.0
        %606 = vmatpush1.xpose.msra.mxu0 0.0
        %607 = vmatprep.subr.mxu0 0.0
        %608 = vmatpush1.xpose.msra.mxu0 0.0
        %609 = vmatprep.subr.mxu0 0.0
        %610 = vmatpush1.xpose.msra.mxu0 0.0
        %611 = vmatprep.subr.mxu0 0.0
        %612 = vmatpush1.xpose.msra.mxu0 0.0
        %613 = vmatprep.mubr.f32.mxu0 0.0
        %614 = vmatmul.mubr.f32.gmra.mrb[0].mxu0 %v544
        %v615 = vpop.f32.mrb[0].mxu0
        %v616 = vadd.f32 0.0, %v615
        %v617 = vpop.f32.mrb[0].mxu0
        %618 = vdwg.mxu0
        %vm619 = vcmask 64512
        %v621 = vsel %vm619, %v535, 0
        %v624 = vsel %vm619, %v536, 0
        %626 = vmatprep.subr.mxu0 0.0
        %627 = vmatpush1.xpose.msra.mxu0 %v624
        %628 = vmatprep.subr.mxu0 0.0
        %629 = vmatpush1.xpose.msra.mxu0 0.0
        %630 = vmatprep.subr.mxu0 0.0
        %631 = vmatpush1.xpose.msra.mxu0 0.0
        %632 = vmatprep.subr.mxu0 0.0
        %633 = vmatpush1.xpose.msra.mxu0 0.0
        %634 = vmatprep.subr.mxu0 0.0
        %635 = vmatpush1.xpose.msra.mxu0 0.0
        %636 = vmatprep.subr.mxu0 0.0
        %637 = vmatpush1.xpose.msra.mxu0 0.0
        %638 = vmatprep.subr.mxu0 0.0
        %639 = vmatpush1.xpose.msra.mxu0 0.0
        %640 = vmatprep.subr.mxu0 0.0
        %641 = vmatpush1.xpose.msra.mxu0 0.0
        %642 = vmatprep.subr.mxu0 0.0
        %643 = vmatpush1.xpose.msra.mxu0 0.0
        %644 = vmatprep.subr.mxu0 0.0
        %645 = vmatpush1.xpose.msra.mxu0 0.0
        %646 = vmatprep.subr.mxu0 0.0
        %647 = vmatpush1.xpose.msra.mxu0 0.0
        %648 = vmatprep.subr.mxu0 0.0
        %649 = vmatpush1.xpose.msra.mxu0 0.0
        %650 = vmatprep.subr.mxu0 0.0
        %651 = vmatpush1.xpose.msra.mxu0 0.0
        %652 = vmatprep.subr.mxu0 0.0
        %653 = vmatpush1.xpose.msra.mxu0 0.0
        %654 = vmatprep.subr.mxu0 0.0
        %655 = vmatpush1.xpose.msra.mxu0 0.0
        %656 = vmatprep.subr.mxu0 0.0
        %657 = vmatpush1.xpose.msra.mxu0 0.0
        %658 = vmatprep.subr.mxu0 0.0
        %659 = vmatpush1.xpose.msra.mxu0 0.0
        %660 = vmatprep.subr.mxu0 0.0
        %661 = vmatpush1.xpose.msra.mxu0 0.0
        %662 = vmatprep.subr.mxu0 0.0
        %663 = vmatpush1.xpose.msra.mxu0 0.0
        %664 = vmatprep.subr.mxu0 0.0
        %665 = vmatpush1.xpose.msra.mxu0 0.0
        %666 = vmatprep.subr.mxu0 0.0
        %667 = vmatpush1.xpose.msra.mxu0 0.0
        %668 = vmatprep.subr.mxu0 0.0
        %669 = vmatpush1.xpose.msra.mxu0 0.0
        %670 = vmatprep.subr.mxu0 0.0
        %671 = vmatpush1.xpose.msra.mxu0 0.0
        %672 = vmatprep.subr.mxu0 0.0
        %673 = vmatpush1.xpose.msra.mxu0 0.0
        %674 = vmatprep.subr.mxu0 0.0
        %675 = vmatpush1.xpose.msra.mxu0 0.0
        %676 = vmatprep.subr.mxu0 0.0
        %677 = vmatpush1.xpose.msra.mxu0 0.0
        %678 = vmatprep.subr.mxu0 0.0
        %679 = vmatpush1.xpose.msra.mxu0 0.0
        %680 = vmatprep.subr.mxu0 0.0
        %681 = vmatpush1.xpose.msra.mxu0 0.0
        %682 = vmatprep.subr.mxu0 0.0
        %683 = vmatpush1.xpose.msra.mxu0 0.0
        %684 = vmatprep.subr.mxu0 0.0
        %685 = vmatpush1.xpose.msra.mxu0 0.0
        %686 = vmatprep.subr.mxu0 0.0
        %687 = vmatpush1.xpose.msra.mxu0 0.0
        %688 = vmatprep.subr.mxu0 0.0
        %689 = vmatpush1.xpose.msra.mxu0 0.0
        %690 = vmatprep.mubr.f32.mxu0 0.0
        %691 = vmatmul.mubr.f32.gmra.mrb[0].mxu0 %v621
        %v692 = vpop.f32.mrb[0].mxu0
        %v693 = vadd.f32 %v616, %v692
        %v694 = vpop.f32.mrb[0].mxu0
        %695 = vdwg.mxu0
        %v697 = vlaneseq
        %v698 = vshrl.u32 %v697, 7
        %v699 = vsub.s32 0, %v698
        %v700 = vrot.slane %v541, %v699
        %v702 = vadd.f32 %v693, %v700
        %v703 = vsel %vm619, %v702, -inf
        %704 = vmax.xlane.f32.xlu0 %v703
        %v705 = vpop.xlane.xlu0 %704
        %v706 = vsub.f32 %v702, %v705
        %v707 = vmul.f32 %v706, 1.442695
        %v708 = vpow.pop %v707
        %v709 = vsel %vm619, %v708, 0.0
        %710 = vadd.xlane.f32.xlu0 %v709
        %v711 = vpop.xlane.xlu0 %710
        %v712 = vrcp.pop %v711
        %v713 = vmul.f32 %v708, %v712
        %v715 = vsel %vm619, %v713, 0
        %717 = vmatprep.subr.mxu0 0.0
        %718 = vmatpush1.msra.mxu0 %v537
        %719 = vmatprep.subr.mxu0 0.0
        %720 = vmatpush1.msra.mxu0 0.0
        %721 = vmatprep.subr.mxu0 0.0
        %722 = vmatpush1.msra.mxu0 0.0
        %723 = vmatprep.subr.mxu0 0.0
        %724 = vmatpush1.msra.mxu0 0.0
        %725 = vmatprep.subr.mxu0 0.0
        %726 = vmatpush1.msra.mxu0 0.0
        %727 = vmatprep.subr.mxu0 0.0
        %728 = vmatpush1.msra.mxu0 0.0
        %729 = vmatprep.subr.mxu0 0.0
        %730 = vmatpush1.msra.mxu0 0.0
        %731 = vmatprep.subr.mxu0 0.0
        %732 = vmatpush1.msra.mxu0 0.0
        %733 = vmatprep.subr.mxu0 0.0
        %734 = vmatpush1.msra.mxu0 0.0
        %735 = vmatprep.subr.mxu0 0.0
        %736 = vmatpush1.msra.mxu0 0.0
        %737 = vmatprep.subr.mxu0 0.0
        %738 = vmatpush1.msra.mxu0 0.0
        %739 = vmatprep.subr.mxu0 0.0
        %740 = vmatpush1.msra.mxu0 0.0
        %741 = vmatprep.subr.mxu0 0.0
        %742 = vmatpush1.msra.mxu0 0.0
        %743 = vmatprep.subr.mxu0 0.0
        %744 = vmatpush1.msra.mxu0 0.0
        %745 = vmatprep.subr.mxu0 0.0
        %746 = vmatpush1.msra.mxu0 0.0
        %747 = vmatprep.subr.mxu0 0.0
        %748 = vmatpush1.msra.mxu0 0.0
        %749 = vmatprep.subr.mxu0 0.0
        %750 = vmatpush1.msra.mxu0 0.0
        %751 = vmatprep.subr.mxu0 0.0
        %752 = vmatpush1.msra.mxu0 0.0
        %753 = vmatprep.subr.mxu0 0.0
        %754 = vmatpush1.msra.mxu0 0.0
        %755 = vmatprep.subr.mxu0 0.0
        %756 = vmatpush1.msra.mxu0 0.0
        %757 = vmatprep.subr.mxu0 0.0
        %758 = vmatpush1.msra.mxu0 0.0
        %759 = vmatprep.subr.mxu0 0.0
        %760 = vmatpush1.msra.mxu0 0.0
        %761 = vmatprep.subr.mxu0 0.0
        %762 = vmatpush1.msra.mxu0 0.0
        %763 = vmatprep.subr.mxu0 0.0
        %764 = vmatpush1.msra.mxu0 0.0
        %765 = vmatprep.subr.mxu0 0.0
        %766 = vmatpush1.msra.mxu0 0.0
        %767 = vmatprep.subr.mxu0 0.0
        %768 = vmatpush1.msra.mxu0 0.0
        %769 = vmatprep.subr.mxu0 0.0
        %770 = vmatpush1.msra.mxu0 0.0
        %771 = vmatprep.subr.mxu0 0.0
        %772 = vmatpush1.msra.mxu0 0.0
        %773 = vmatprep.subr.mxu0 0.0
        %774 = vmatpush1.msra.mxu0 0.0
        %775 = vmatprep.subr.mxu0 0.0
        %776 = vmatpush1.msra.mxu0 0.0
        %777 = vmatprep.subr.mxu0 0.0
        %778 = vmatpush1.msra.mxu0 0.0
        %779 = vmatprep.subr.mxu0 0.0
        %780 = vmatpush1.msra.mxu0 0.0
        %781 = vmatprep.mubr.f32.mxu0 0.0
        %782 = vmatmul.mubr.f32.gmra.mrb[0].mxu0 %v715
        %v783 = vpop.f32.mrb[0].mxu0
        %v784 = vadd.f32 0.0, %v783
        %v785 = vpop.f32.mrb[0].mxu0
        %786 = vdwg.mxu0
        %787 = vmatprep.subr.mxu0 0.0
        %788 = vmatpush1.msra.mxu0 %v540
        %789 = vmatprep.subr.mxu0 0.0
        %790 = vmatpush1.msra.mxu0 0.0
        %791 = vmatprep.subr.mxu0 0.0
        %792 = vmatpush1.msra.mxu0 0.0
        %793 = vmatprep.subr.mxu0 0.0
        %794 = vmatpush1.msra.mxu0 0.0
        %795 = vmatprep.subr.mxu0 0.0
        %796 = vmatpush1.msra.mxu0 0.0
        %797 = vmatprep.subr.mxu0 0.0
        %798 = vmatpush1.msra.mxu0 0.0
        %799 = vmatprep.subr.mxu0 0.0
        %800 = vmatpush1.msra.mxu0 0.0
        %801 = vmatprep.subr.mxu0 0.0
        %802 = vmatpush1.msra.mxu0 0.0
        %803 = vmatprep.subr.mxu0 0.0
        %804 = vmatpush1.msra.mxu0 0.0
        %805 = vmatprep.subr.mxu0 0.0
        %806 = vmatpush1.msra.mxu0 0.0
        %807 = vmatprep.subr.mxu0 0.0
        %808 = vmatpush1.msra.mxu0 0.0
        %809 = vmatprep.subr.mxu0 0.0
        %810 = vmatpush1.msra.mxu0 0.0
        %811 = vmatprep.subr.mxu0 0.0
        %812 = vmatpush1.msra.mxu0 0.0
        %813 = vmatprep.subr.mxu0 0.0
        %814 = vmatpush1.msra.mxu0 0.0
        %815 = vmatprep.subr.mxu0 0.0
        %816 = vmatpush1.msra.mxu0 0.0
        %817 = vmatprep.subr.mxu0 0.0
        %818 = vmatpush1.msra.mxu0 0.0
        %819 = vmatprep.subr.mxu0 0.0
        %820 = vmatpush1.msra.mxu0 0.0
        %821 = vmatprep.subr.mxu0 0.0
        %822 = vmatpush1.msra.mxu0 0.0
        %823 = vmatprep.subr.mxu0 0.0
        %824 = vmatpush1.msra.mxu0 0.0
        %825 = vmatprep.subr.mxu0 0.0
        %826 = vmatpush1.msra.mxu0 0.0
        %827 = vmatprep.subr.mxu0 0.0
        %828 = vmatpush1.msra.mxu0 0.0
        %829 = vmatprep.subr.mxu0 0.0
        %830 = vmatpush1.msra.mxu0 0.0
        %831 = vmatprep.subr.mxu0 0.0
        %832 = vmatpush1.msra.mxu0 0.0
        %833 = vmatprep.subr.mxu0 0.0
        %834 = vmatpush1.msra.mxu0 0.0
        %835 = vmatprep.subr.mxu0 0.0
        %836 = vmatpush1.msra.mxu0 0.0
        %837 = vmatprep.subr.mxu0 0.0
        %838 = vmatpush1.msra.mxu0 0.0
        %839 = vmatprep.subr.mxu0 0.0
        %840 = vmatpush1.msra.mxu0 0.0
        %841 = vmatprep.subr.mxu0 0.0
        %842 = vmatpush1.msra.mxu0 0.0
        %843 = vmatprep.subr.mxu0 0.0
        %844 = vmatpush1.msra.mxu0 0.0
        %845 = vmatprep.subr.mxu0 0.0
        %846 = vmatpush1.msra.mxu0 0.0
        %847 = vmatprep.subr.mxu0 0.0
        %848 = vmatpush1.msra.mxu0 0.0
        %849 = vmatprep.subr.mxu0 0.0
        %850 = vmatpush1.msra.mxu0 0.0
        %851 = vmatprep.mubr.f32.mxu0 0.0
        %852 = vmatmul.mubr.f32.gmra.mrb[0].mxu0 %v715
        %v853 = vpop.f32.mrb[0].mxu0
        %v854 = vadd.f32 0.0, %v853
        %v855 = vpop.f32.mrb[0].mxu0
        %856 = vdwg.mxu0
        %857 = vrot.lane.b32.xlu0 %v538, 124
        %v858 = vpop.permute.xlu0 %857
        %859 = vrot.lane.b32.xlu0 %v539, 124
        %v860 = vpop.permute.xlu0 %859
        %v861 = vsel %vm542, %v858, 0
        %v863 = vsel %vm542, %v860, 0
        %865 = vmatprep.subr.mxu0 0.0
        %866 = vmatpush1.xpose.msra.mxu0 %v863
        %867 = vmatprep.subr.mxu0 0.0
        %868 = vmatpush1.xpose.msra.mxu0 0.0
        %869 = vmatprep.subr.mxu0 0.0
        %870 = vmatpush1.xpose.msra.mxu0 0.0
        %871 = vmatprep.subr.mxu0 0.0
        %872 = vmatpush1.xpose.msra.mxu0 0.0
        %873 = vmatprep.subr.mxu0 0.0
        %874 = vmatpush1.xpose.msra.mxu0 0.0
        %875 = vmatprep.subr.mxu0 0.0
        %876 = vmatpush1.xpose.msra.mxu0 0.0
        %877 = vmatprep.subr.mxu0 0.0
        %878 = vmatpush1.xpose.msra.mxu0 0.0
        %879 = vmatprep.subr.mxu0 0.0
        %880 = vmatpush1.xpose.msra.mxu0 0.0
        %881 = vmatprep.subr.mxu0 0.0
        %882 = vmatpush1.xpose.msra.mxu0 0.0
        %883 = vmatprep.subr.mxu0 0.0
        %884 = vmatpush1.xpose.msra.mxu0 0.0
        %885 = vmatprep.subr.mxu0 0.0
        %886 = vmatpush1.xpose.msra.mxu0 0.0
        %887 = vmatprep.subr.mxu0 0.0
        %888 = vmatpush1.xpose.msra.mxu0 0.0
        %889 = vmatprep.subr.mxu0 0.0
        %890 = vmatpush1.xpose.msra.mxu0 0.0
        %891 = vmatprep.subr.mxu0 0.0
        %892 = vmatpush1.xpose.msra.mxu0 0.0
        %893 = vmatprep.subr.mxu0 0.0
        %894 = vmatpush1.xpose.msra.mxu0 0.0
        %895 = vmatprep.subr.mxu0 0.0
        %896 = vmatpush1.xpose.msra.mxu0 0.0
        %897 = vmatprep.subr.mxu0 0.0
        %898 = vmatpush1.xpose.msra.mxu0 0.0
        %899 = vmatprep.subr.mxu0 0.0
        %900 = vmatpush1.xpose.msra.mxu0 0.0
        %901 = vmatprep.subr.mxu0 0.0
        %902 = vmatpush1.xpose.msra.mxu0 0.0
        %903 = vmatprep.subr.mxu0 0.0
        %904 = vmatpush1.xpose.msra.mxu0 0.0
        %905 = vmatprep.subr.mxu0 0.0
        %906 = vmatpush1.xpose.msra.mxu0 0.0
        %907 = vmatprep.subr.mxu0 0.0
        %908 = vmatpush1.xpose.msra.mxu0 0.0
        %909 = vmatprep.subr.mxu0 0.0
        %910 = vmatpush1.xpose.msra.mxu0 0.0
        %911 = vmatprep.subr.mxu0 0.0
        %912 = vmatpush1.xpose.msra.mxu0 0.0
        %913 = vmatprep.subr.mxu0 0.0
        %914 = vmatpush1.xpose.msra.mxu0 0.0
        %915 = vmatprep.subr.mxu0 0.0
        %916 = vmatpush1.xpose.msra.mxu0 0.0
        %917 = vmatprep.subr.mxu0 0.0
        %918 = vmatpush1.xpose.msra.mxu0 0.0
        %919 = vmatprep.subr.mxu0 0.0
        %920 = vmatpush1.xpose.msra.mxu0 0.0
        %921 = vmatprep.subr.mxu0 0.0
        %922 = vmatpush1.xpose.msra.mxu0 0.0
        %923 = vmatprep.subr.mxu0 0.0
        %924 = vmatpush1.xpose.msra.mxu0 0.0
        %925 = vmatprep.subr.mxu0 0.0
        %926 = vmatpush1.xpose.msra.mxu0 0.0
        %927 = vmatprep.subr.mxu0 0.0
        %928 = vmatpush1.xpose.msra.mxu0 0.0
        %929 = vmatprep.mubr.f32.mxu0 0.0
        %930 = vmatmul.mubr.f32.gmra.mrb[0].mxu0 %v861
        %v931 = vpop.f32.mrb[0].mxu0
        %v932 = vadd.f32 0.0, %v931
        %v933 = vpop.f32.mrb[0].mxu0
        %934 = vdwg.mxu0
        %935 = vrot.lane.b32.xlu0 %v535, 120
        %v936 = vpop.permute.xlu0 %935
        %937 = vrot.lane.b32.xlu0 %v536, 120
        %v938 = vpop.permute.xlu0 %937
        %v939 = vsel %vm619, %v936, 0
        %v941 = vsel %vm619, %v938, 0
        %943 = vmatprep.subr.mxu0 0.0
        %944 = vmatpush1.xpose.msra.mxu0 %v941
        %945 = vmatprep.subr.mxu0 0.0
        %946 = vmatpush1.xpose.msra.mxu0 0.0
        %947 = vmatprep.subr.mxu0 0.0
        %948 = vmatpush1.xpose.msra.mxu0 0.0
        %949 = vmatprep.subr.mxu0 0.0
        %950 = vmatpush1.xpose.msra.mxu0 0.0
        %951 = vmatprep.subr.mxu0 0.0
        %952 = vmatpush1.xpose.msra.mxu0 0.0
        %953 = vmatprep.subr.mxu0 0.0
        %954 = vmatpush1.xpose.msra.mxu0 0.0
        %955 = vmatprep.subr.mxu0 0.0
        %956 = vmatpush1.xpose.msra.mxu0 0.0
        %957 = vmatprep.subr.mxu0 0.0
        %958 = vmatpush1.xpose.msra.mxu0 0.0
        %959 = vmatprep.subr.mxu0 0.0
        %960 = vmatpush1.xpose.msra.mxu0 0.0
        %961 = vmatprep.subr.mxu0 0.0
        %962 = vmatpush1.xpose.msra.mxu0 0.0
        %963 = vmatprep.subr.mxu0 0.0
        %964 = vmatpush1.xpose.msra.mxu0 0.0
        %965 = vmatprep.subr.mxu0 0.0
        %966 = vmatpush1.xpose.msra.mxu0 0.0
        %967 = vmatprep.subr.mxu0 0.0
        %968 = vmatpush1.xpose.msra.mxu0 0.0
        %969 = vmatprep.subr.mxu0 0.0
        %970 = vmatpush1.xpose.msra.mxu0 0.0
        %971 = vmatprep.subr.mxu0 0.0
        %972 = vmatpush1.xpose.msra.mxu0 0.0
        %973 = vmatprep.subr.mxu0 0.0
        %974 = vmatpush1.xpose.msra.mxu0 0.0
        %975 = vmatprep.subr.mxu0 0.0
        %976 = vmatpush1.xpose.msra.mxu0 0.0
        %977 = vmatprep.subr.mxu0 0.0
        %978 = vmatpush1.xpose.msra.mxu0 0.0
        %979 = vmatprep.subr.mxu0 0.0
        %980 = vmatpush1.xpose.msra.mxu0 0.0
        %981 = vmatprep.subr.mxu0 0.0
        %982 = vmatpush1.xpose.msra.mxu0 0.0
        %983 = vmatprep.subr.mxu0 0.0
        %984 = vmatpush1.xpose.msra.mxu0 0.0
        %985 = vmatprep.subr.mxu0 0.0
        %986 = vmatpush1.xpose.msra.mxu0 0.0
        %987 = vmatprep.subr.mxu0 0.0
        %988 = vmatpush1.xpose.msra.mxu0 0.0
        %989 = vmatprep.subr.mxu0 0.0
        %990 = vmatpush1.xpose.msra.mxu0 0.0
        %991 = vmatprep.subr.mxu0 0.0
        %992 = vmatpush1.xpose.msra.mxu0 0.0
        %993 = vmatprep.subr.mxu0 0.0
        %994 = vmatpush1.xpose.msra.mxu0 0.0
        %995 = vmatprep.subr.mxu0 0.0
        %996 = vmatpush1.xpose.msra.mxu0 0.0
        %997 = vmatprep.subr.mxu0 0.0
        %998 = vmatpush1.xpose.msra.mxu0 0.0
        %999 = vmatprep.subr.mxu0 0.0
        %1000 = vmatpush1.xpose.msra.mxu0 0.0
        %1001 = vmatprep.subr.mxu0 0.0
        %1002 = vmatpush1.xpose.msra.mxu0 0.0
        %1003 = vmatprep.subr.mxu0 0.0
        %1004 = vmatpush1.xpose.msra.mxu0 0.0
        %1005 = vmatprep.subr.mxu0 0.0
        %1006 = vmatpush1.xpose.msra.mxu0 0.0
        %1007 = vmatprep.mubr.f32.mxu0 0.0
        %1008 = vmatmul.mubr.f32.gmra.mrb[0].mxu0 %v939
        %v1009 = vpop.f32.mrb[0].mxu0
        %v1010 = vadd.f32 %v932, %v1009
        %v1011 = vpop.f32.mrb[0].mxu0
        %1012 = vdwg.mxu0
        %v1013 = vadd.f32 %v1010, %v700
        %v1014 = vsel %vm619, %v1013, -inf
        %1015 = vmax.xlane.f32.xlu0 %v1014
        %v1016 = vpop.xlane.xlu0 %1015
        %v1017 = vsub.f32 %v1013, %v1016
        %v1018 = vmul.f32 %v1017, 1.442695
        %v1019 = vpow.pop %v1018
        %v1020 = vsel %vm619, %v1019, 0.0
        %1021 = vadd.xlane.f32.xlu0 %v1020
        %v1022 = vpop.xlane.xlu0 %1021
        %v1023 = vrcp.pop %v1022
        %v1024 = vmul.f32 %v1019, %v1023
        %1026 = vrot.lane.b32.xlu0 %v537, 120
        %v1027 = vpop.permute.xlu0 %1026
        %v1030 = vsel %vm619, %v1024, 0
        %1032 = vmatprep.subr.mxu0 0.0
        %1033 = vmatpush1.msra.mxu0 %v1027
        %1034 = vmatprep.subr.mxu0 0.0
        %1035 = vmatpush1.msra.mxu0 0.0
        %1036 = vmatprep.subr.mxu0 0.0
        %1037 = vmatpush1.msra.mxu0 0.0
        %1038 = vmatprep.subr.mxu0 0.0
        %1039 = vmatpush1.msra.mxu0 0.0
        %1040 = vmatprep.subr.mxu0 0.0
        %1041 = vmatpush1.msra.mxu0 0.0
        %1042 = vmatprep.subr.mxu0 0.0
        %1043 = vmatpush1.msra.mxu0 0.0
        %1044 = vmatprep.subr.mxu0 0.0
        %1045 = vmatpush1.msra.mxu0 0.0
        %1046 = vmatprep.subr.mxu0 0.0
        %1047 = vmatpush1.msra.mxu0 0.0
        %1048 = vmatprep.subr.mxu0 0.0
        %1049 = vmatpush1.msra.mxu0 0.0
        %1050 = vmatprep.subr.mxu0 0.0
        %1051 = vmatpush1.msra.mxu0 0.0
        %1052 = vmatprep.subr.mxu0 0.0
        %1053 = vmatpush1.msra.mxu0 0.0
        %1054 = vmatprep.subr.mxu0 0.0
        %1055 = vmatpush1.msra.mxu0 0.0
        %1056 = vmatprep.subr.mxu0 0.0
        %1057 = vmatpush1.msra.mxu0 0.0
        %1058 = vmatprep.subr.mxu0 0.0
        %1059 = vmatpush1.msra.mxu0 0.0
        %1060 = vmatprep.subr.mxu0 0.0
        %1061 = vmatpush1.msra.mxu0 0.0
        %1062 = vmatprep.subr.mxu0 0.0
        %1063 = vmatpush1.msra.mxu0 0.0
        %1064 = vmatprep.subr.mxu0 0.0
        %1065 = vmatpush1.msra.mxu0 0.0
        %1066 = vmatprep.subr.mxu0 0.0
        %1067 = vmatpush1.msra.mxu0 0.0
        %1068 = vmatprep.subr.mxu0 0.0
        %1069 = vmatpush1.msra.mxu0 0.0
        %1070 = vmatprep.subr.mxu0 0.0
        %1071 = vmatpush1.msra.mxu0 0.0
        %1072 = vmatprep.subr.mxu0 0.0
        %1073 = vmatpush1.msra.mxu0 0.0
        %1074 = vmatprep.subr.mxu0 0.0
        %1075 = vmatpush1.msra.mxu0 0.0
        %1076 = vmatprep.subr.mxu0 0.0
        %1077 = vmatpush1.msra.mxu0 0.0
        %1078 = vmatprep.subr.mxu0 0.0
        %1079 = vmatpush1.msra.mxu0 0.0
        %1080 = vmatprep.subr.mxu0 0.0
        %1081 = vmatpush1.msra.mxu0 0.0
        %1082 = vmatprep.subr.mxu0 0.0
        %1083 = vmatpush1.msra.mxu0 0.0
        %1084 = vmatprep.subr.mxu0 0.0
        %1085 = vmatpush1.msra.mxu0 0.0
        %1086 = vmatprep.subr.mxu0 0.0
        %1087 = vmatpush1.msra.mxu0 0.0
        %1088 = vmatprep.subr.mxu0 0.0
        %1089 = vmatpush1.msra.mxu0 0.0
        %1090 = vmatprep.subr.mxu0 0.0
        %1091 = vmatpush1.msra.mxu0 0.0
        %1092 = vmatprep.subr.mxu0 0.0
        %1093 = vmatpush1.msra.mxu0 0.0
        %1094 = vmatprep.subr.mxu0 0.0
        %1095 = vmatpush1.msra.mxu0 0.0
        %1096 = vmatprep.mubr.f32.mxu0 0.0
        %1097 = vmatmul.mubr.f32.gmra.mrb[0].mxu0 %v1030
        %v1098 = vpop.f32.mrb[0].mxu0
        %v1099 = vadd.f32 0.0, %v1098
        %v1100 = vpop.f32.mrb[0].mxu0
        %1101 = vdwg.mxu0
        %1103 = vrot.lane.b32.xlu0 %v540, 124
        %v1104 = vpop.permute.xlu0 %1103
        %1106 = vmatprep.subr.mxu0 0.0
        %1107 = vmatpush1.msra.mxu0 %v1104
        %1108 = vmatprep.subr.mxu0 0.0
        %1109 = vmatpush1.msra.mxu0 0.0
        %1110 = vmatprep.subr.mxu0 0.0
        %1111 = vmatpush1.msra.mxu0 0.0
        %1112 = vmatprep.subr.mxu0 0.0
        %1113 = vmatpush1.msra.mxu0 0.0
        %1114 = vmatprep.subr.mxu0 0.0
        %1115 = vmatpush1.msra.mxu0 0.0
        %1116 = vmatprep.subr.mxu0 0.0
        %1117 = vmatpush1.msra.mxu0 0.0
        %1118 = vmatprep.subr.mxu0 0.0
        %1119 = vmatpush1.msra.mxu0 0.0
        %1120 = vmatprep.subr.mxu0 0.0
        %1121 = vmatpush1.msra.mxu0 0.0
        %1122 = vmatprep.subr.mxu0 0.0
        %1123 = vmatpush1.msra.mxu0 0.0
        %1124 = vmatprep.subr.mxu0 0.0
        %1125 = vmatpush1.msra.mxu0 0.0
        %1126 = vmatprep.subr.mxu0 0.0
        %1127 = vmatpush1.msra.mxu0 0.0
        %1128 = vmatprep.subr.mxu0 0.0
        %1129 = vmatpush1.msra.mxu0 0.0
        %1130 = vmatprep.subr.mxu0 0.0
        %1131 = vmatpush1.msra.mxu0 0.0
        %1132 = vmatprep.subr.mxu0 0.0
        %1133 = vmatpush1.msra.mxu0 0.0
        %1134 = vmatprep.subr.mxu0 0.0
        %1135 = vmatpush1.msra.mxu0 0.0
        %1136 = vmatprep.subr.mxu0 0.0
        %1137 = vmatpush1.msra.mxu0 0.0
        %1138 = vmatprep.subr.mxu0 0.0
        %1139 = vmatpush1.msra.mxu0 0.0
        %1140 = vmatprep.subr.mxu0 0.0
        %1141 = vmatpush1.msra.mxu0 0.0
        %1142 = vmatprep.subr.mxu0 0.0
        %1143 = vmatpush1.msra.mxu0 0.0
        %1144 = vmatprep.subr.mxu0 0.0
        %1145 = vmatpush1.msra.mxu0 0.0
        %1146 = vmatprep.subr.mxu0 0.0
        %1147 = vmatpush1.msra.mxu0 0.0
        %1148 = vmatprep.subr.mxu0 0.0
        %1149 = vmatpush1.msra.mxu0 0.0
        %1150 = vmatprep.subr.mxu0 0.0
        %1151 = vmatpush1.msra.mxu0 0.0
        %1152 = vmatprep.subr.mxu0 0.0
        %1153 = vmatpush1.msra.mxu0 0.0
        %1154 = vmatprep.subr.mxu0 0.0
        %1155 = vmatpush1.msra.mxu0 0.0
        %1156 = vmatprep.subr.mxu0 0.0
        %1157 = vmatpush1.msra.mxu0 0.0
        %1158 = vmatprep.subr.mxu0 0.0
        %1159 = vmatpush1.msra.mxu0 0.0
        %1160 = vmatprep.subr.mxu0 0.0
        %1161 = vmatpush1.msra.mxu0 0.0
        %1162 = vmatprep.subr.mxu0 0.0
        %1163 = vmatpush1.msra.mxu0 0.0
        %1164 = vmatprep.subr.mxu0 0.0
        %1165 = vmatpush1.msra.mxu0 0.0
        %1166 = vmatprep.subr.mxu0 0.0
        %1167 = vmatpush1.msra.mxu0 0.0
        %1168 = vmatprep.subr.mxu0 0.0
        %1169 = vmatpush1.msra.mxu0 0.0
        %1170 = vmatprep.mubr.f32.mxu0 0.0
        %1171 = vmatmul.mubr.f32.gmra.mrb[0].mxu0 %v1030
        %v1172 = vpop.f32.mrb[0].mxu0
        %v1173 = vadd.f32 0.0, %v1172
        %v1174 = vpop.f32.mrb[0].mxu0
        %1175 = vdwg.mxu0
        %1176 = vrot.lane.b32.xlu0 %v538, 120
        %v1177 = vpop.permute.xlu0 %1176
        %1178 = vrot.lane.b32.xlu0 %v539, 120
        %v1179 = vpop.permute.xlu0 %1178
        %v1180 = vsel %vm542, %v1177, 0
        %v1182 = vsel %vm542, %v1179, 0
        %1184 = vmatprep.subr.mxu0 0.0
        %1185 = vmatpush1.xpose.msra.mxu0 %v1182
        %1186 = vmatprep.subr.mxu0 0.0
        %1187 = vmatpush1.xpose.msra.mxu0 0.0
        %1188 = vmatprep.subr.mxu0 0.0
        %1189 = vmatpush1.xpose.msra.mxu0 0.0
        %1190 = vmatprep.subr.mxu0 0.0
        %1191 = vmatpush1.xpose.msra.mxu0 0.0
        %1192 = vmatprep.subr.mxu0 0.0
        %1193 = vmatpush1.xpose.msra.mxu0 0.0
        %1194 = vmatprep.subr.mxu0 0.0
        %1195 = vmatpush1.xpose.msra.mxu0 0.0
        %1196 = vmatprep.subr.mxu0 0.0
        %1197 = vmatpush1.xpose.msra.mxu0 0.0
        %1198 = vmatprep.subr.mxu0 0.0
        %1199 = vmatpush1.xpose.msra.mxu0 0.0
        %1200 = vmatprep.subr.mxu0 0.0
        %1201 = vmatpush1.xpose.msra.mxu0 0.0
        %1202 = vmatprep.subr.mxu0 0.0
        %1203 = vmatpush1.xpose.msra.mxu0 0.0
        %1204 = vmatprep.subr.mxu0 0.0
        %1205 = vmatpush1.xpose.msra.mxu0 0.0
        %1206 = vmatprep.subr.mxu0 0.0
        %1207 = vmatpush1.xpose.msra.mxu0 0.0
        %1208 = vmatprep.subr.mxu0 0.0
        %1209 = vmatpush1.xpose.msra.mxu0 0.0
        %1210 = vmatprep.subr.mxu0 0.0
        %1211 = vmatpush1.xpose.msra.mxu0 0.0
        %1212 = vmatprep.subr.mxu0 0.0
        %1213 = vmatpush1.xpose.msra.mxu0 0.0
        %1214 = vmatprep.subr.mxu0 0.0
        %1215 = vmatpush1.xpose.msra.mxu0 0.0
        %1216 = vmatprep.subr.mxu0 0.0
        %1217 = vmatpush1.xpose.msra.mxu0 0.0
        %1218 = vmatprep.subr.mxu0 0.0
        %1219 = vmatpush1.xpose.msra.mxu0 0.0
        %1220 = vmatprep.subr.mxu0 0.0
        %1221 = vmatpush1.xpose.msra.mxu0 0.0
        %1222 = vmatprep.subr.mxu0 0.0
        %1223 = vmatpush1.xpose.msra.mxu0 0.0
        %1224 = vmatprep.subr.mxu0 0.0
        %1225 = vmatpush1.xpose.msra.mxu0 0.0
        %1226 = vmatprep.subr.mxu0 0.0
        %1227 = vmatpush1.xpose.msra.mxu0 0.0
        %1228 = vmatprep.subr.mxu0 0.0
        %1229 = vmatpush1.xpose.msra.mxu0 0.0
        %1230 = vmatprep.subr.mxu0 0.0
        %1231 = vmatpush1.xpose.msra.mxu0 0.0
        %1232 = vmatprep.subr.mxu0 0.0
        %1233 = vmatpush1.xpose.msra.mxu0 0.0
        %1234 = vmatprep.subr.mxu0 0.0
        %1235 = vmatpush1.xpose.msra.mxu0 0.0
        %1236 = vmatprep.subr.mxu0 0.0
        %1237 = vmatpush1.xpose.msra.mxu0 0.0
        %1238 = vmatprep.subr.mxu0 0.0
        %1239 = vmatpush1.xpose.msra.mxu0 0.0
        %1240 = vmatprep.subr.mxu0 0.0
        %1241 = vmatpush1.xpose.msra.mxu0 0.0
        %1242 = vmatprep.subr.mxu0 0.0
        %1243 = vmatpush1.xpose.msra.mxu0 0.0
        %1244 = vmatprep.subr.mxu0 0.0
        %1245 = vmatpush1.xpose.msra.mxu0 0.0
        %1246 = vmatprep.subr.mxu0 0.0
        %1247 = vmatpush1.xpose.msra.mxu0 0.0
        %1248 = vmatprep.mubr.f32.mxu0 0.0
        %1249 = vmatmul.mubr.f32.gmra.mrb[0].mxu0 %v1180
        %v1250 = vpop.f32.mrb[0].mxu0
        %v1251 = vadd.f32 0.0, %v1250
        %v1252 = vpop.f32.mrb[0].mxu0
        %1253 = vdwg.mxu0
        %1254 = vrot.lane.b32.xlu0 %v535, 112
        %v1255 = vpop.permute.xlu0 %1254
        %1256 = vrot.lane.b32.xlu0 %v536, 112
        %v1257 = vpop.permute.xlu0 %1256
        %v1258 = vsel %vm619, %v1255, 0
        %v1260 = vsel %vm619, %v1257, 0
        %1262 = vmatprep.subr.mxu0 0.0
        %1263 = vmatpush1.xpose.msra.mxu0 %v1260
        %1264 = vmatprep.subr.mxu0 0.0
        %1265 = vmatpush1.xpose.msra.mxu0 0.0
        %1266 = vmatprep.subr.mxu0 0.0
        %1267 = vmatpush1.xpose.msra.mxu0 0.0
        %1268 = vmatprep.subr.mxu0 0.0
        %1269 = vmatpush1.xpose.msra.mxu0 0.0
        %1270 = vmatprep.subr.mxu0 0.0
        %1271 = vmatpush1.xpose.msra.mxu0 0.0
        %1272 = vmatprep.subr.mxu0 0.0
        %1273 = vmatpush1.xpose.msra.mxu0 0.0
        %1274 = vmatprep.subr.mxu0 0.0
        %1275 = vmatpush1.xpose.msra.mxu0 0.0
        %1276 = vmatprep.subr.mxu0 0.0
        %1277 = vmatpush1.xpose.msra.mxu0 0.0
        %1278 = vmatprep.subr.mxu0 0.0
        %1279 = vmatpush1.xpose.msra.mxu0 0.0
        %1280 = vmatprep.subr.mxu0 0.0
        %1281 = vmatpush1.xpose.msra.mxu0 0.0
        %1282 = vmatprep.subr.mxu0 0.0
        %1283 = vmatpush1.xpose.msra.mxu0 0.0
        %1284 = vmatprep.subr.mxu0 0.0
        %1285 = vmatpush1.xpose.msra.mxu0 0.0
        %1286 = vmatprep.subr.mxu0 0.0
        %1287 = vmatpush1.xpose.msra.mxu0 0.0
        %1288 = vmatprep.subr.mxu0 0.0
        %1289 = vmatpush1.xpose.msra.mxu0 0.0
        %1290 = vmatprep.subr.mxu0 0.0
        %1291 = vmatpush1.xpose.msra.mxu0 0.0
        %1292 = vmatprep.subr.mxu0 0.0
        %1293 = vmatpush1.xpose.msra.mxu0 0.0
        %1294 = vmatprep.subr.mxu0 0.0
        %1295 = vmatpush1.xpose.msra.mxu0 0.0
        %1296 = vmatprep.subr.mxu0 0.0
        %1297 = vmatpush1.xpose.msra.mxu0 0.0
        %1298 = vmatprep.subr.mxu0 0.0
        %1299 = vmatpush1.xpose.msra.mxu0 0.0
        %1300 = vmatprep.subr.mxu0 0.0
        %1301 = vmatpush1.xpose.msra.mxu0 0.0
        %1302 = vmatprep.subr.mxu0 0.0
        %1303 = vmatpush1.xpose.msra.mxu0 0.0
        %1304 = vmatprep.subr.mxu0 0.0
        %1305 = vmatpush1.xpose.msra.mxu0 0.0
        %1306 = vmatprep.subr.mxu0 0.0
        %1307 = vmatpush1.xpose.msra.mxu0 0.0
        %1308 = vmatprep.subr.mxu0 0.0
        %1309 = vmatpush1.xpose.msra.mxu0 0.0
        %1310 = vmatprep.subr.mxu0 0.0
        %1311 = vmatpush1.xpose.msra.mxu0 0.0
        %1312 = vmatprep.subr.mxu0 0.0
        %1313 = vmatpush1.xpose.msra.mxu0 0.0
        %1314 = vmatprep.subr.mxu0 0.0
        %1315 = vmatpush1.xpose.msra.mxu0 0.0
        %1316 = vmatprep.subr.mxu0 0.0
        %1317 = vmatpush1.xpose.msra.mxu0 0.0
        %1318 = vmatprep.subr.mxu0 0.0
        %1319 = vmatpush1.xpose.msra.mxu0 0.0
        %1320 = vmatprep.subr.mxu0 0.0
        %1321 = vmatpush1.xpose.msra.mxu0 0.0
        %1322 = vmatprep.subr.mxu0 0.0
        %1323 = vmatpush1.xpose.msra.mxu0 0.0
        %1324 = vmatprep.subr.mxu0 0.0
        %1325 = vmatpush1.xpose.msra.mxu0 0.0
        %1326 = vmatprep.mubr.f32.mxu0 0.0
        %1327 = vmatmul.mubr.f32.gmra.mrb[0].mxu0 %v1258
        %v1328 = vpop.f32.mrb[0].mxu0
        %v1329 = vadd.f32 %v1251, %v1328
        %v1330 = vpop.f32.mrb[0].mxu0
        %1331 = vdwg.mxu0
        %v1332 = vadd.f32 %v1329, %v700
        %v1333 = vsel %vm619, %v1332, -inf
        %1334 = vmax.xlane.f32.xlu0 %v1333
        %v1335 = vpop.xlane.xlu0 %1334
        %v1336 = vsub.f32 %v1332, %v1335
        %v1337 = vmul.f32 %v1336, 1.442695
        %v1338 = vpow.pop %v1337
        %v1339 = vsel %vm619, %v1338, 0.0
        %1340 = vadd.xlane.f32.xlu0 %v1339
        %v1341 = vpop.xlane.xlu0 %1340
        %v1342 = vrcp.pop %v1341
        %v1343 = vmul.f32 %v1338, %v1342
        %1344 = vrot.lane.b32.xlu0 %v537, 112
        %v1345 = vpop.permute.xlu0 %1344
        %v1348 = vsel %vm619, %v1343, 0
        %1350 = vmatprep.subr.mxu0 0.0
        %1351 = vmatpush1.msra.mxu0 %v1345
        %1352 = vmatprep.subr.mxu0 0.0
        %1353 = vmatpush1.msra.mxu0 0.0
        %1354 = vmatprep.subr.mxu0 0.0
        %1355 = vmatpush1.msra.mxu0 0.0
        %1356 = vmatprep.subr.mxu0 0.0
        %1357 = vmatpush1.msra.mxu0 0.0
        %1358 = vmatprep.subr.mxu0 0.0
        %1359 = vmatpush1.msra.mxu0 0.0
        %1360 = vmatprep.subr.mxu0 0.0
        %1361 = vmatpush1.msra.mxu0 0.0
        %1362 = vmatprep.subr.mxu0 0.0
        %1363 = vmatpush1.msra.mxu0 0.0
        %1364 = vmatprep.subr.mxu0 0.0
        %1365 = vmatpush1.msra.mxu0 0.0
        %1366 = vmatprep.subr.mxu0 0.0
        %1367 = vmatpush1.msra.mxu0 0.0
        %1368 = vmatprep.subr.mxu0 0.0
        %1369 = vmatpush1.msra.mxu0 0.0
        %1370 = vmatprep.subr.mxu0 0.0
        %1371 = vmatpush1.msra.mxu0 0.0
        %1372 = vmatprep.subr.mxu0 0.0
        %1373 = vmatpush1.msra.mxu0 0.0
        %1374 = vmatprep.subr.mxu0 0.0
        %1375 = vmatpush1.msra.mxu0 0.0
        %1376 = vmatprep.subr.mxu0 0.0
        %1377 = vmatpush1.msra.mxu0 0.0
        %1378 = vmatprep.subr.mxu0 0.0
        %1379 = vmatpush1.msra.mxu0 0.0
        %1380 = vmatprep.subr.mxu0 0.0
        %1381 = vmatpush1.msra.mxu0 0.0
        %1382 = vmatprep.subr.mxu0 0.0
        %1383 = vmatpush1.msra.mxu0 0.0
        %1384 = vmatprep.subr.mxu0 0.0
        %1385 = vmatpush1.msra.mxu0 0.0
        %1386 = vmatprep.subr.mxu0 0.0
        %1387 = vmatpush1.msra.mxu0 0.0
        %1388 = vmatprep.subr.mxu0 0.0
        %1389 = vmatpush1.msra.mxu0 0.0
        %1390 = vmatprep.subr.mxu0 0.0
        %1391 = vmatpush1.msra.mxu0 0.0
        %1392 = vmatprep.subr.mxu0 0.0
        %1393 = vmatpush1.msra.mxu0 0.0
        %1394 = vmatprep.subr.mxu0 0.0
        %1395 = vmatpush1.msra.mxu0 0.0
        %1396 = vmatprep.subr.mxu0 0.0
        %1397 = vmatpush1.msra.mxu0 0.0
        %1398 = vmatprep.subr.mxu0 0.0
        %1399 = vmatpush1.msra.mxu0 0.0
        %1400 = vmatprep.subr.mxu0 0.0
        %1401 = vmatpush1.msra.mxu0 0.0
        %1402 = vmatprep.subr.mxu0 0.0
        %1403 = vmatpush1.msra.mxu0 0.0
        %1404 = vmatprep.subr.mxu0 0.0
        %1405 = vmatpush1.msra.mxu0 0.0
        %1406 = vmatprep.subr.mxu0 0.0
        %1407 = vmatpush1.msra.mxu0 0.0
        %1408 = vmatprep.subr.mxu0 0.0
        %1409 = vmatpush1.msra.mxu0 0.0
        %1410 = vmatprep.subr.mxu0 0.0
        %1411 = vmatpush1.msra.mxu0 0.0
        %1412 = vmatprep.subr.mxu0 0.0
        %1413 = vmatpush1.msra.mxu0 0.0
        %1414 = vmatprep.mubr.f32.mxu0 0.0
        %1415 = vmatmul.mubr.f32.gmra.mrb[0].mxu0 %v1348
        %v1416 = vpop.f32.mrb[0].mxu0
        %v1417 = vadd.f32 0.0, %v1416
        %v1418 = vpop.f32.mrb[0].mxu0
        %1419 = vdwg.mxu0
        %1420 = vrot.lane.b32.xlu0 %v540, 120
        %v1421 = vpop.permute.xlu0 %1420
        %1423 = vmatprep.subr.mxu0 0.0
        %1424 = vmatpush1.msra.mxu0 %v1421
        %1425 = vmatprep.subr.mxu0 0.0
        %1426 = vmatpush1.msra.mxu0 0.0
        %1427 = vmatprep.subr.mxu0 0.0
        %1428 = vmatpush1.msra.mxu0 0.0
        %1429 = vmatprep.subr.mxu0 0.0
        %1430 = vmatpush1.msra.mxu0 0.0
        %1431 = vmatprep.subr.mxu0 0.0
        %1432 = vmatpush1.msra.mxu0 0.0
        %1433 = vmatprep.subr.mxu0 0.0
        %1434 = vmatpush1.msra.mxu0 0.0
        %1435 = vmatprep.subr.mxu0 0.0
        %1436 = vmatpush1.msra.mxu0 0.0
        %1437 = vmatprep.subr.mxu0 0.0
        %1438 = vmatpush1.msra.mxu0 0.0
        %1439 = vmatprep.subr.mxu0 0.0
        %1440 = vmatpush1.msra.mxu0 0.0
        %1441 = vmatprep.subr.mxu0 0.0
        %1442 = vmatpush1.msra.mxu0 0.0
        %1443 = vmatprep.subr.mxu0 0.0
        %1444 = vmatpush1.msra.mxu0 0.0
        %1445 = vmatprep.subr.mxu0 0.0
        %1446 = vmatpush1.msra.mxu0 0.0
        %1447 = vmatprep.subr.mxu0 0.0
        %1448 = vmatpush1.msra.mxu0 0.0
        %1449 = vmatprep.subr.mxu0 0.0
        %1450 = vmatpush1.msra.mxu0 0.0
        %1451 = vmatprep.subr.mxu0 0.0
        %1452 = vmatpush1.msra.mxu0 0.0
        %1453 = vmatprep.subr.mxu0 0.0
        %1454 = vmatpush1.msra.mxu0 0.0
        %1455 = vmatprep.subr.mxu0 0.0
        %1456 = vmatpush1.msra.mxu0 0.0
        %1457 = vmatprep.subr.mxu0 0.0
        %1458 = vmatpush1.msra.mxu0 0.0
        %1459 = vmatprep.subr.mxu0 0.0
        %1460 = vmatpush1.msra.mxu0 0.0
        %1461 = vmatprep.subr.mxu0 0.0
        %1462 = vmatpush1.msra.mxu0 0.0
        %1463 = vmatprep.subr.mxu0 0.0
        %1464 = vmatpush1.msra.mxu0 0.0
        %1465 = vmatprep.subr.mxu0 0.0
        %1466 = vmatpush1.msra.mxu0 0.0
        %1467 = vmatprep.subr.mxu0 0.0
        %1468 = vmatpush1.msra.mxu0 0.0
        %1469 = vmatprep.subr.mxu0 0.0
        %1470 = vmatpush1.msra.mxu0 0.0
        %1471 = vmatprep.subr.mxu0 0.0
        %1472 = vmatpush1.msra.mxu0 0.0
        %1473 = vmatprep.subr.mxu0 0.0
        %1474 = vmatpush1.msra.mxu0 0.0
        %1475 = vmatprep.subr.mxu0 0.0
        %1476 = vmatpush1.msra.mxu0 0.0
        %1477 = vmatprep.subr.mxu0 0.0
        %1478 = vmatpush1.msra.mxu0 0.0
        %1479 = vmatprep.subr.mxu0 0.0
        %1480 = vmatpush1.msra.mxu0 0.0
        %1481 = vmatprep.subr.mxu0 0.0
        %1482 = vmatpush1.msra.mxu0 0.0
        %1483 = vmatprep.subr.mxu0 0.0
        %1484 = vmatpush1.msra.mxu0 0.0
        %1485 = vmatprep.subr.mxu0 0.0
        %1486 = vmatpush1.msra.mxu0 0.0
        %1487 = vmatprep.mubr.f32.mxu0 0.0
        %1488 = vmatmul.mubr.f32.gmra.mrb[0].mxu0 %v1348
        %v1489 = vpop.f32.mrb[0].mxu0
        %v1490 = vadd.f32 0.0, %v1489
        %v1491 = vpop.f32.mrb[0].mxu0
        %1492 = vdwg.mxu0
        %1493 = vrot.lane.b32.xlu0 %v538, 116
        %v1494 = vpop.permute.xlu0 %1493
        %1495 = vrot.lane.b32.xlu0 %v539, 116
        %v1496 = vpop.permute.xlu0 %1495
        %v1497 = vsel %vm542, %v1494, 0
        %v1499 = vsel %vm542, %v1496, 0
        %1501 = vmatprep.subr.mxu0 0.0
        %1502 = vmatpush1.xpose.msra.mxu0 %v1499
        %1503 = vmatprep.subr.mxu0 0.0
        %1504 = vmatpush1.xpose.msra.mxu0 0.0
        %1505 = vmatprep.subr.mxu0 0.0
        %1506 = vmatpush1.xpose.msra.mxu0 0.0
        %1507 = vmatprep.subr.mxu0 0.0
        %1508 = vmatpush1.xpose.msra.mxu0 0.0
        %1509 = vmatprep.subr.mxu0 0.0
        %1510 = vmatpush1.xpose.msra.mxu0 0.0
        %1511 = vmatprep.subr.mxu0 0.0
        %1512 = vmatpush1.xpose.msra.mxu0 0.0
        %1513 = vmatprep.subr.mxu0 0.0
        %1514 = vmatpush1.xpose.msra.mxu0 0.0
        %1515 = vmatprep.subr.mxu0 0.0
        %1516 = vmatpush1.xpose.msra.mxu0 0.0
        %1517 = vmatprep.subr.mxu0 0.0
        %1518 = vmatpush1.xpose.msra.mxu0 0.0
        %1519 = vmatprep.subr.mxu0 0.0
        %1520 = vmatpush1.xpose.msra.mxu0 0.0
        %1521 = vmatprep.subr.mxu0 0.0
        %1522 = vmatpush1.xpose.msra.mxu0 0.0
        %1523 = vmatprep.subr.mxu0 0.0
        %1524 = vmatpush1.xpose.msra.mxu0 0.0
        %1525 = vmatprep.subr.mxu0 0.0
        %1526 = vmatpush1.xpose.msra.mxu0 0.0
        %1527 = vmatprep.subr.mxu0 0.0
        %1528 = vmatpush1.xpose.msra.mxu0 0.0
        %1529 = vmatprep.subr.mxu0 0.0
        %1530 = vmatpush1.xpose.msra.mxu0 0.0
        %1531 = vmatprep.subr.mxu0 0.0
        %1532 = vmatpush1.xpose.msra.mxu0 0.0
        %1533 = vmatprep.subr.mxu0 0.0
        %1534 = vmatpush1.xpose.msra.mxu0 0.0
        %1535 = vmatprep.subr.mxu0 0.0
        %1536 = vmatpush1.xpose.msra.mxu0 0.0
        %1537 = vmatprep.subr.mxu0 0.0
        %1538 = vmatpush1.xpose.msra.mxu0 0.0
        %1539 = vmatprep.subr.mxu0 0.0
        %1540 = vmatpush1.xpose.msra.mxu0 0.0
        %1541 = vmatprep.subr.mxu0 0.0
        %1542 = vmatpush1.xpose.msra.mxu0 0.0
        %1543 = vmatprep.subr.mxu0 0.0
        %1544 = vmatpush1.xpose.msra.mxu0 0.0
        %1545 = vmatprep.subr.mxu0 0.0
        %1546 = vmatpush1.xpose.msra.mxu0 0.0
        %1547 = vmatprep.subr.mxu0 0.0
        %1548 = vmatpush1.xpose.msra.mxu0 0.0
        %1549 = vmatprep.subr.mxu0 0.0
        %1550 = vmatpush1.xpose.msra.mxu0 0.0
        %1551 = vmatprep.subr.mxu0 0.0
        %1552 = vmatpush1.xpose.msra.mxu0 0.0
        %1553 = vmatprep.subr.mxu0 0.0
        %1554 = vmatpush1.xpose.msra.mxu0 0.0
        %1555 = vmatprep.subr.mxu0 0.0
        %1556 = vmatpush1.xpose.msra.mxu0 0.0
        %1557 = vmatprep.subr.mxu0 0.0
        %1558 = vmatpush1.xpose.msra.mxu0 0.0
        %1559 = vmatprep.subr.mxu0 0.0
        %1560 = vmatpush1.xpose.msra.mxu0 0.0
        %1561 = vmatprep.subr.mxu0 0.0
        %1562 = vmatpush1.xpose.msra.mxu0 0.0
        %1563 = vmatprep.subr.mxu0 0.0
        %1564 = vmatpush1.xpose.msra.mxu0 0.0
        %1565 = vmatprep.mubr.f32.mxu0 0.0
        %1566 = vmatmul.mubr.f32.gmra.mrb[0].mxu0 %v1497
        %v1567 = vpop.f32.mrb[0].mxu0
        %v1568 = vadd.f32 0.0, %v1567
        %v1569 = vpop.f32.mrb[0].mxu0
        %1570 = vdwg.mxu0
        %1571 = vrot.lane.b32.xlu0 %v535, 104
        %v1572 = vpop.permute.xlu0 %1571
        %1573 = vrot.lane.b32.xlu0 %v536, 104
        %v1574 = vpop.permute.xlu0 %1573
        %v1575 = vsel %vm619, %v1572, 0
        %v1577 = vsel %vm619, %v1574, 0
        %1579 = vmatprep.subr.mxu0 0.0
        %1580 = vmatpush1.xpose.msra.mxu0 %v1577
        %1581 = vmatprep.subr.mxu0 0.0
        %1582 = vmatpush1.xpose.msra.mxu0 0.0
        %1583 = vmatprep.subr.mxu0 0.0
        %1584 = vmatpush1.xpose.msra.mxu0 0.0
        %1585 = vmatprep.subr.mxu0 0.0
        %1586 = vmatpush1.xpose.msra.mxu0 0.0
        %1587 = vmatprep.subr.mxu0 0.0
        %1588 = vmatpush1.xpose.msra.mxu0 0.0
        %1589 = vmatprep.subr.mxu0 0.0
        %1590 = vmatpush1.xpose.msra.mxu0 0.0
        %1591 = vmatprep.subr.mxu0 0.0
        %1592 = vmatpush1.xpose.msra.mxu0 0.0
        %1593 = vmatprep.subr.mxu0 0.0
        %1594 = vmatpush1.xpose.msra.mxu0 0.0
        %1595 = vmatprep.subr.mxu0 0.0
        %1596 = vmatpush1.xpose.msra.mxu0 0.0
        %1597 = vmatprep.subr.mxu0 0.0
        %1598 = vmatpush1.xpose.msra.mxu0 0.0
        %1599 = vmatprep.subr.mxu0 0.0
        %1600 = vmatpush1.xpose.msra.mxu0 0.0
        %1601 = vmatprep.subr.mxu0 0.0
        %1602 = vmatpush1.xpose.msra.mxu0 0.0
        %1603 = vmatprep.subr.mxu0 0.0
        %1604 = vmatpush1.xpose.msra.mxu0 0.0
        %1605 = vmatprep.subr.mxu0 0.0
        %1606 = vmatpush1.xpose.msra.mxu0 0.0
        %1607 = vmatprep.subr.mxu0 0.0
        %1608 = vmatpush1.xpose.msra.mxu0 0.0
        %1609 = vmatprep.subr.mxu0 0.0
        %1610 = vmatpush1.xpose.msra.mxu0 0.0
        %1611 = vmatprep.subr.mxu0 0.0
        %1612 = vmatpush1.xpose.msra.mxu0 0.0
        %1613 = vmatprep.subr.mxu0 0.0
        %1614 = vmatpush1.xpose.msra.mxu0 0.0
        %1615 = vmatprep.subr.mxu0 0.0
        %1616 = vmatpush1.xpose.msra.mxu0 0.0
        %1617 = vmatprep.subr.mxu0 0.0
        %1618 = vmatpush1.xpose.msra.mxu0 0.0
        %1619 = vmatprep.subr.mxu0 0.0
        %1620 = vmatpush1.xpose.msra.mxu0 0.0
        %1621 = vmatprep.subr.mxu0 0.0
        %1622 = vmatpush1.xpose.msra.mxu0 0.0
        %1623 = vmatprep.subr.mxu0 0.0
        %1624 = vmatpush1.xpose.msra.mxu0 0.0
        %1625 = vmatprep.subr.mxu0 0.0
        %1626 = vmatpush1.xpose.msra.mxu0 0.0
        %1627 = vmatprep.subr.mxu0 0.0
        %1628 = vmatpush1.xpose.msra.mxu0 0.0
        %1629 = vmatprep.subr.mxu0 0.0
        %1630 = vmatpush1.xpose.msra.mxu0 0.0
        %1631 = vmatprep.subr.mxu0 0.0
        %1632 = vmatpush1.xpose.msra.mxu0 0.0
        %1633 = vmatprep.subr.mxu0 0.0
        %1634 = vmatpush1.xpose.msra.mxu0 0.0
        %1635 = vmatprep.subr.mxu0 0.0
        %1636 = vmatpush1.xpose.msra.mxu0 0.0
        %1637 = vmatprep.subr.mxu0 0.0
        %1638 = vmatpush1.xpose.msra.mxu0 0.0
        %1639 = vmatprep.subr.mxu0 0.0
        %1640 = vmatpush1.xpose.msra.mxu0 0.0
        %1641 = vmatprep.subr.mxu0 0.0
        %1642 = vmatpush1.xpose.msra.mxu0 0.0
        %1643 = vmatprep.mubr.f32.mxu0 0.0
        %1644 = vmatmul.mubr.f32.gmra.mrb[0].mxu0 %v1575
        %v1645 = vpop.f32.mrb[0].mxu0
        %v1646 = vadd.f32 %v1568, %v1645
        %v1647 = vpop.f32.mrb[0].mxu0
        %1648 = vdwg.mxu0
        %v1649 = vadd.f32 %v1646, %v700
        %v1650 = vsel %vm619, %v1649, -inf
        %1651 = vmax.xlane.f32.xlu0 %v1650
        %v1652 = vpop.xlane.xlu0 %1651
        %v1653 = vsub.f32 %v1649, %v1652
        %v1654 = vmul.f32 %v1653, 1.442695
        %v1655 = vpow.pop %v1654
        %v1656 = vsel %vm619, %v1655, 0.0
        %1657 = vadd.xlane.f32.xlu0 %v1656
        %v1658 = vpop.xlane.xlu0 %1657
        %v1659 = vrcp.pop %v1658
        %v1660 = vmul.f32 %v1655, %v1659
        %1661 = vrot.lane.b32.xlu0 %v537, 104
        %v1662 = vpop.permute.xlu0 %1661
        %v1665 = vsel %vm619, %v1660, 0
        %1667 = vmatprep.subr.mxu0 0.0
        %1668 = vmatpush1.msra.mxu0 %v1662
        %1669 = vmatprep.subr.mxu0 0.0
        %1670 = vmatpush1.msra.mxu0 0.0
        %1671 = vmatprep.subr.mxu0 0.0
        %1672 = vmatpush1.msra.mxu0 0.0
        %1673 = vmatprep.subr.mxu0 0.0
        %1674 = vmatpush1.msra.mxu0 0.0
        %1675 = vmatprep.subr.mxu0 0.0
        %1676 = vmatpush1.msra.mxu0 0.0
        %1677 = vmatprep.subr.mxu0 0.0
        %1678 = vmatpush1.msra.mxu0 0.0
        %1679 = vmatprep.subr.mxu0 0.0
        %1680 = vmatpush1.msra.mxu0 0.0
        %1681 = vmatprep.subr.mxu0 0.0
        %1682 = vmatpush1.msra.mxu0 0.0
        %1683 = vmatprep.subr.mxu0 0.0
        %1684 = vmatpush1.msra.mxu0 0.0
        %1685 = vmatprep.subr.mxu0 0.0
        %1686 = vmatpush1.msra.mxu0 0.0
        %1687 = vmatprep.subr.mxu0 0.0
        %1688 = vmatpush1.msra.mxu0 0.0
        %1689 = vmatprep.subr.mxu0 0.0
        %1690 = vmatpush1.msra.mxu0 0.0
        %1691 = vmatprep.subr.mxu0 0.0
        %1692 = vmatpush1.msra.mxu0 0.0
        %1693 = vmatprep.subr.mxu0 0.0
        %1694 = vmatpush1.msra.mxu0 0.0
        %1695 = vmatprep.subr.mxu0 0.0
        %1696 = vmatpush1.msra.mxu0 0.0
        %1697 = vmatprep.subr.mxu0 0.0
        %1698 = vmatpush1.msra.mxu0 0.0
        %1699 = vmatprep.subr.mxu0 0.0
        %1700 = vmatpush1.msra.mxu0 0.0
        %1701 = vmatprep.subr.mxu0 0.0
        %1702 = vmatpush1.msra.mxu0 0.0
        %1703 = vmatprep.subr.mxu0 0.0
        %1704 = vmatpush1.msra.mxu0 0.0
        %1705 = vmatprep.subr.mxu0 0.0
        %1706 = vmatpush1.msra.mxu0 0.0
        %1707 = vmatprep.subr.mxu0 0.0
        %1708 = vmatpush1.msra.mxu0 0.0
        %1709 = vmatprep.subr.mxu0 0.0
        %1710 = vmatpush1.msra.mxu0 0.0
        %1711 = vmatprep.subr.mxu0 0.0
        %1712 = vmatpush1.msra.mxu0 0.0
        %1713 = vmatprep.subr.mxu0 0.0
        %1714 = vmatpush1.msra.mxu0 0.0
        %1715 = vmatprep.subr.mxu0 0.0
        %1716 = vmatpush1.msra.mxu0 0.0
        %1717 = vmatprep.subr.mxu0 0.0
        %1718 = vmatpush1.msra.mxu0 0.0
        %1719 = vmatprep.subr.mxu0 0.0
        %1720 = vmatpush1.msra.mxu0 0.0
        %1721 = vmatprep.subr.mxu0 0.0
        %1722 = vmatpush1.msra.mxu0 0.0
        %1723 = vmatprep.subr.mxu0 0.0
        %1724 = vmatpush1.msra.mxu0 0.0
        %1725 = vmatprep.subr.mxu0 0.0
        %1726 = vmatpush1.msra.mxu0 0.0
        %1727 = vmatprep.subr.mxu0 0.0
        %1728 = vmatpush1.msra.mxu0 0.0
        %1729 = vmatprep.subr.mxu0 0.0
        %1730 = vmatpush1.msra.mxu0 0.0
        %1731 = vmatprep.mubr.f32.mxu0 0.0
        %1732 = vmatmul.mubr.f32.gmra.mrb[0].mxu0 %v1665
        %v1733 = vpop.f32.mrb[0].mxu0
        %v1734 = vadd.f32 0.0, %v1733
        %v1735 = vpop.f32.mrb[0].mxu0
        %1736 = vdwg.mxu0
        %1737 = vrot.lane.b32.xlu0 %v540, 116
        %v1738 = vpop.permute.xlu0 %1737
        %1740 = vmatprep.subr.mxu0 0.0
        %1741 = vmatpush1.msra.mxu0 %v1738
        %1742 = vmatprep.subr.mxu0 0.0
        %1743 = vmatpush1.msra.mxu0 0.0
        %1744 = vmatprep.subr.mxu0 0.0
        %1745 = vmatpush1.msra.mxu0 0.0
        %1746 = vmatprep.subr.mxu0 0.0
        %1747 = vmatpush1.msra.mxu0 0.0
        %1748 = vmatprep.subr.mxu0 0.0
        %1749 = vmatpush1.msra.mxu0 0.0
        %1750 = vmatprep.subr.mxu0 0.0
        %1751 = vmatpush1.msra.mxu0 0.0
        %1752 = vmatprep.subr.mxu0 0.0
        %1753 = vmatpush1.msra.mxu0 0.0
        %1754 = vmatprep.subr.mxu0 0.0
        %1755 = vmatpush1.msra.mxu0 0.0
        %1756 = vmatprep.subr.mxu0 0.0
        %1757 = vmatpush1.msra.mxu0 0.0
        %1758 = vmatprep.subr.mxu0 0.0
        %1759 = vmatpush1.msra.mxu0 0.0
        %1760 = vmatprep.subr.mxu0 0.0
        %1761 = vmatpush1.msra.mxu0 0.0
        %1762 = vmatprep.subr.mxu0 0.0
        %1763 = vmatpush1.msra.mxu0 0.0
        %1764 = vmatprep.subr.mxu0 0.0
        %1765 = vmatpush1.msra.mxu0 0.0
        %1766 = vmatprep.subr.mxu0 0.0
        %1767 = vmatpush1.msra.mxu0 0.0
        %1768 = vmatprep.subr.mxu0 0.0
        %1769 = vmatpush1.msra.mxu0 0.0
        %1770 = vmatprep.subr.mxu0 0.0
        %1771 = vmatpush1.msra.mxu0 0.0
        %1772 = vmatprep.subr.mxu0 0.0
        %1773 = vmatpush1.msra.mxu0 0.0
        %1774 = vmatprep.subr.mxu0 0.0
        %1775 = vmatpush1.msra.mxu0 0.0
        %1776 = vmatprep.subr.mxu0 0.0
        %1777 = vmatpush1.msra.mxu0 0.0
        %1778 = vmatprep.subr.mxu0 0.0
        %1779 = vmatpush1.msra.mxu0 0.0
        %1780 = vmatprep.subr.mxu0 0.0
        %1781 = vmatpush1.msra.mxu0 0.0
        %1782 = vmatprep.subr.mxu0 0.0
        %1783 = vmatpush1.msra.mxu0 0.0
        %1784 = vmatprep.subr.mxu0 0.0
        %1785 = vmatpush1.msra.mxu0 0.0
        %1786 = vmatprep.subr.mxu0 0.0
        %1787 = vmatpush1.msra.mxu0 0.0
        %1788 = vmatprep.subr.mxu0 0.0
        %1789 = vmatpush1.msra.mxu0 0.0
        %1790 = vmatprep.subr.mxu0 0.0
        %1791 = vmatpush1.msra.mxu0 0.0
        %1792 = vmatprep.subr.mxu0 0.0
        %1793 = vmatpush1.msra.mxu0 0.0
        %1794 = vmatprep.subr.mxu0 0.0
        %1795 = vmatpush1.msra.mxu0 0.0
        %1796 = vmatprep.subr.mxu0 0.0
        %1797 = vmatpush1.msra.mxu0 0.0
        %1798 = vmatprep.subr.mxu0 0.0
        %1799 = vmatpush1.msra.mxu0 0.0
        %1800 = vmatprep.subr.mxu0 0.0
        %1801 = vmatpush1.msra.mxu0 0.0
        %1802 = vmatprep.subr.mxu0 0.0
        %1803 = vmatpush1.msra.mxu0 0.0
        %1804 = vmatprep.mubr.f32.mxu0 0.0
        %1805 = vmatmul.mubr.f32.gmra.mrb[0].mxu0 %v1665
        %v1806 = vpop.f32.mrb[0].mxu0
        %v1807 = vadd.f32 0.0, %v1806
        %v1808 = vpop.f32.mrb[0].mxu0
        %1809 = vdwg.mxu0
        %1811 = vrot.lane.b32.xlu0 %v1099, 8
        %v1812 = vpop.permute.xlu0 %1811
        %1815 = vrot.lane.b32.xlu0 %v1417, 16
        %v1816 = vpop.permute.xlu0 %1815
        %1819 = vrot.lane.b32.xlu0 %v1734, 24
        %v1820 = vpop.permute.xlu0 %1819
        %v1822 = vsel %vm619, %v784, %v1812
        %vm1823 = vcmask 130048
        %v1824 = vsel %vm1823, %v1822, %v1816
        %vm1825 = vcmask 195584
        %v1826 = vsel %vm1825, %v1824, %v1820
        %vm1827 = vcmask 261120
        %1828 = vst.msk [vmem:[%s517] sm:$0xff] %vm1827, %v1826
        %1830 = vrot.lane.b32.xlu0 %v1173, 4
        %v1831 = vpop.permute.xlu0 %1830
        %1834 = vrot.lane.b32.xlu0 %v1490, 8
        %v1835 = vpop.permute.xlu0 %1834
        %1838 = vrot.lane.b32.xlu0 %v1807, 12
        %v1839 = vpop.permute.xlu0 %1838
        %v1841 = vsel %vm542, %v854, %v1831
        %v1842 = vsel %vm619, %v1841, %v1835
        %vm1843 = vcmask 97280
        %v1844 = vsel %vm1843, %v1842, %v1839
        %1845 = vst.msk [vmem:[%s524] sm:$0xff] %vm1823, %v1844
        %s1846 = sand.u32 %s243, 1
        %s1847 = scalar_lea.sflag [#allocation4], %s1846
        %s1848 = sand.u32 %s243, 1
        %s1849 = smul.addr %s1848, 8
        %s1850 = scalar_lea.vmem [#allocation11], %s1849
        %s1851 = sand.u32 %s271, 1
        %s1852 = scalar_lea.sflag [#allocation13], %s1851
        %s1853 = sand.u32 %s271, 1
        %s1854 = smul.addr %s1853, 8
        %s1855 = scalar_lea.vmem [#allocation12], %s1854
        // Predicated region
        $region69: #{lilt_self_attention_forward.5} parent=47 // pred_check
          %p1856 = pneg %p253
        $region70: #{lilt_self_attention_forward.5} parent=47 // pred_check_branch
          %1858 = sbr.rel (%p1856) target = $region72
        $region71: #{lilt_self_attention_forward.5} parent=47 // pred_region
          %s1860 = ssub.s32 128, 128
          %1861 = vsyncadd %s1847, %s1860
          %s1862 = sadd.s32 %s40, %s39
          %s1863 = smul.addr %s1862, 128
          %s1864 = scalar_lea.hbm %s7, %s1863
          %s1866 = sshll.u32 %s1850, 4
          %s1867 = int_to_ptr.vmem [resolvable:$true] %s1866
          %1869 = dma.vmem_to_hbm [thread:$0]  %s1867, 128, %s1864, %s1847
        $region72: #{lilt_self_attention_forward.5} parent=47 // pred_fallthru
          _
        // Predicated region
        $region73: #{lilt_self_attention_forward.5} parent=47 // pred_check
          %p1870 = pneg %p281
        $region74: #{lilt_self_attention_forward.5} parent=47 // pred_check_branch
          %1872 = sbr.rel (%p1870) target = $region76
        $region75: #{lilt_self_attention_forward.5} parent=47 // pred_region
          %s1874 = ssub.s32 128, 128
          %1875 = vsyncadd %s1852, %s1874
          %s1876 = sadd.s32 %s40, %s39
          %s1877 = smul.addr %s1876, 128
          %s1878 = scalar_lea.hbm %s8, %s1877
          %s1880 = sshll.u32 %s1855, 4
          %s1881 = int_to_ptr.vmem [resolvable:$true] %s1880
          %1883 = dma.vmem_to_hbm [thread:$0]  %s1881, 128, %s1878, %s1852
        $region76: #{lilt_self_attention_forward.5} parent=47 // pred_fallthru
          _
      $region48: #{lilt_self_attention_forward.5} parent=5 // pred_fallthru
        _
      %p1884 = scmp.le.s32.totalorder 2, %s30
      // Predicated region
      $region77: #{lilt_self_attention_forward.5} parent=5 // pred_check
        %p1885 = pneg %p1884
      $region78: #{lilt_self_attention_forward.5} parent=5 // pred_check_branch
        %1887 = sbr.rel (%p1885) target = $region80
      $region79: #{lilt_self_attention_forward.5} parent=5 // pred_region
        %s1888 = ssub.s32 %s30, 2
        // Predicated region
        $region81: #{lilt_self_attention_forward.5} parent=79 // pred_check
          %p1889 = pneg %p259
        $region82: #{lilt_self_attention_forward.5} parent=79 // pred_check_branch
          %1891 = sbr.rel (%p1889) target = $region84
        $region83: #{lilt_self_attention_forward.5} parent=79 // pred_region
          %s1892 = sand.u32 %s244, 1
          %s1893 = scalar_lea.sflag [#allocation4], %s1892
          %s1894 = sand.u32 %s244, 1
          %s1895 = smul.addr %s1894, 8
          %s1896 = scalar_lea.vmem [#allocation11], %s1895
          %1897 = dma.done %s1893, 128
        $region84: #{lilt_self_attention_forward.5} parent=79 // pred_fallthru
          _
        // Predicated region
        $region85: #{lilt_self_attention_forward.5} parent=79 // pred_check
          %p1898 = pneg %p287
        $region86: #{lilt_self_attention_forward.5} parent=79 // pred_check_branch
          %1900 = sbr.rel (%p1898) target = $region88
        $region87: #{lilt_self_attention_forward.5} parent=79 // pred_region
          %s1901 = sand.u32 %s272, 1
          %s1902 = scalar_lea.sflag [#allocation13], %s1901
          %s1903 = sand.u32 %s272, 1
          %s1904 = smul.addr %s1903, 8
          %s1905 = scalar_lea.vmem [#allocation12], %s1904
          %1906 = dma.done %s1902, 128
        $region88: #{lilt_self_attention_forward.5} parent=79 // pred_fallthru
          _
      $region80: #{lilt_self_attention_forward.5} parent=5 // pred_fallthru
        _
    $region6: #{lilt_self_attention_forward.5} parent=1 // loop_footer
      %s34 = sadd.s32 1, %s30
    $region7: #{lilt_self_attention_forward.5} parent=1 // loop_footer_branch
      %29 = sbr.rel target = $region3
    $region8: #{lilt_self_attention_forward.5} parent=1 // loop_exit
      _
    %1907 = vsyncpa [#allocation3], 1
    %s1908 = scalar_lea.sflag [#allocation3], 1
    %1909 = vsyncpa %s1908, 1
    %1910 = vsyncpa [#allocation6], 1
    %s1911 = scalar_lea.sflag [#allocation6], 1
    %1912 = vsyncpa %s1911, 1
    %1913 = vsyncpa [#allocation9], 1
    %s1914 = scalar_lea.sflag [#allocation9], 1
    %1915 = vsyncpa %s1914, 1
    %1916 = vsyncpa [#allocation4], 1
    %s1917 = scalar_lea.sflag [#allocation4], 1
    %1918 = vsyncpa %s1917, 1
    %1919 = vsyncpa [#allocation13], 1
    %s1920 = scalar_lea.sflag [#allocation13], 1
    %1921 = vsyncpa %s1920, 1

</llo_original>
